<compile_context>
chip_gen: v7x
topology: tpu7x:2x2x1
jax: 0.10.0
libtpu: 0.0.40
codegen_flags: <defaults>
</compile_context>

<pallas_src>
import functools

import jax
import jax.numpy as jnp
import numpy as np
from jax.experimental import pallas as pl
from jax.experimental.pallas import tpu as pltpu

_BN_EPS = 1e-5


# --------------------------------------------------------------------------------------
# Fused kernel: phase 0 = fc1(+pool fold) + batch-sum accumulation into VMEM,
#               phase 1 = centered-variance BN fold -> fc2 -> hard one-hot.
# --------------------------------------------------------------------------------------
def fused_routing_kernel(x_ref, w1_ref, b1_ref, gamma_ref, beta_ref, w2_ref, b2_ref,
                         out_ref,
                         h_ref, sum_ref, scale_ref, shift_ref,
                         *, tile_b, batch, n_pad, path_count):
    # x_ref:     (tile_b, C*H*W) bf16   -- raw NCHW tile, flattened (pool folded into w1)
    # w1_ref:    (C*H*W, F) bf16        -- fc1 weight expanded over pooling windows, /(s*s)
    # b1/gamma/beta: (1, F) f32 ; w2: (F, P) f32 ; b2: (1, P) f32
    # out_ref:   (tile_b, P) f32        -- hard one-hot routing decision (phase 1 only)
    # h_ref:     (B_pad, F) f32 VMEM    -- fc1 output, resident across both phases
    # sum_ref:   (1, F) f32 VMEM        -- batch sum accumulator
    # scale_ref/shift_ref: (1, F) f32 VMEM -- folded BN scale/shift (computed once)
    p = pl.program_id(0)                      # 0 = fc1 + stats, 1 = BN + fc2 + route
    i = pl.program_id(1)                      # batch-tile index
    start = pl.multiple_of(i * tile_b, tile_b)

    @pl.when((p == 0) & (i == 0))
    def _init():
        sum_ref[...] = jnp.zeros_like(sum_ref)

    @pl.when(p == 0)
    def _phase0():
        h = jnp.dot(x_ref[...], w1_ref[...],
                    preferred_element_type=jnp.float32) + b1_ref[...]     # [tile_b, F] f32
        if n_pad:
            # Zero padded rows so they drop out of the batch statistics (and contribute a
            # known mu^2 term to the centered sum-of-squares, corrected in phase 1).
            row = i * tile_b + jax.lax.broadcasted_iota(jnp.int32, h.shape, 0)
            h = jnp.where(row < batch, h, 0.0)
        h_ref[pl.ds(start, tile_b), :] = h
        sum_ref[...] += jnp.sum(h, axis=0, keepdims=True)

    @pl.when((p == 1) & (i == 0))
    def _fold_bn():
        inv_n = 1.0 / float(batch)
        mu = sum_ref[...] * inv_n                                         # [1, F]
        d = h_ref[...] - mu                                               # VMEM-resident pass
        ssq = jnp.sum(d * d, axis=0, keepdims=True)
        if n_pad:
            ssq = ssq - float(n_pad) * (mu * mu)                          # remove zero-pad rows
        var = ssq * inv_n                                                 # biased batch variance
        scale = gamma_ref[...] * jax.lax.rsqrt(var + _BN_EPS)
        scale_ref[...] = scale
        shift_ref[...] = beta_ref[...] - mu * scale

    @pl.when(p == 1)
    def _phase1():
        h_t = h_ref[pl.ds(start, tile_b), :]
        # scale/shift are precomputed once; the per-tile FMA on a (tile_b, 32) tile rides
        # under the fc2 matmul (folding scale into w2 would need a lane->sublane relayout).
        h_bn = h_t * scale_ref[...] + shift_ref[...]
        act = jnp.dot(h_bn, w2_ref[...],
                      preferred_element_type=jnp.float32) + b2_ref[...]   # [tile_b, P]
        # Hard one-hot of argmax taken directly from the activations:
        # argmax(softmax(act / T)) == argmax(act) for T > 0, so softmax/temperature are skipped.
        col = jax.lax.broadcasted_iota(jnp.int32, act.shape, 1)
        row_max = jnp.max(act, axis=1, keepdims=True)
        idx = jnp.min(jnp.where(act == row_max, col, path_count),
                      axis=1, keepdims=True)                              # first maximal index
        out_ref[...] = (col == idx).astype(out_ref.dtype)


# --------------------------------------------------------------------------------------
# Host-side helpers.
# --------------------------------------------------------------------------------------
def _round_up(x, m):
    return ((x + m - 1) // m) * m


def _vmem_limit_bytes():
    """Per-generation scoped VMEM limit (96 MiB on v5e/v6e, ~48 MiB on v7x, safe fallback)."""
    try:
        cap = int(pltpu.get_tpu_info().vmem_capacity_bytes)
    except Exception:
        cap = 64 << 20                      # conservative: v7x per-TensorCore VMEM
    return int(max(32 << 20, min(cap - (16 << 20), 96 << 20)))


def _pick_tile_b(batch, d_raw, feat, path_count, budget_bytes, cap=1024):
    """Largest 16-aligned batch tile whose VMEM footprint fits the budget."""
    tile = min(_round_up(batch, 16), cap)
    while True:
        b_pad = _round_up(batch, tile)
        need = (2 * tile * d_raw * 2          # double-buffered bf16 x tile
                + 2 * d_raw * feat * 2        # w1e (conservatively double-buffered)
                + b_pad * feat * 4            # persistent h scratch
                + 2 * tile * path_count * 4   # double-buffered output tile
                + (2 << 20))                  # params, stat scratches, margin
        if need <= budget_bytes or tile <= 16:
            return tile
        tile -= 16
    # TODO(synk): if B*feat*4 alone exceeds VMEM (extreme batches), fall back to a two-call
    #             design with h staged through HBM.


def _expand_w1(w1, channels, hp, wp, stride):
    """Fold AvgPool2d(stride) + Flatten into fc1: replicate each fc1 row across its pooling
    window and pre-scale by 1/(stride*stride), so the MXU does the pooling reduction."""
    feat = w1.shape[1]
    w1r = w1.reshape(channels, hp, wp, feat)
    w1e = jnp.broadcast_to(w1r[:, :, None, :, None, :],
                           (channels, hp, stride, wp, stride, feat))
    return (w1e * (1.0 / float(stride * stride))).reshape(channels * hp * stride * wp * stride,
                                                          feat)


def init_params(key, feature_dim, path_count, linear_in_dim):
    """Deterministic synthetic parameters (PyTorch-Linear-like uniform init)."""
    k1, k2, k3, k4 = jax.random.split(key, 4)
    lim1 = 1.0 / np.sqrt(linear_in_dim)
    lim2 = 1.0 / np.sqrt(feature_dim)
    w1 = jax.random.uniform(k1, (linear_in_dim, feature_dim), jnp.float32, -lim1, lim1)
    b1 = jax.random.uniform(k2, (1, feature_dim), jnp.float32, -lim1, lim1)
    w2 = jax.random.uniform(k3, (feature_dim, path_count), jnp.float32, -lim2, lim2)
    b2 = jax.random.uniform(k4, (1, path_count), jnp.float32, -lim2, lim2)
    gamma = jnp.ones((1, feature_dim), jnp.float32)
    beta = jnp.zeros((1, feature_dim), jnp.float32)
    return dict(w1=w1, b1=b1, w2=w2, b2=b2, gamma=gamma, beta=beta)


@functools.partial(jax.jit, static_argnames=("avg_pool_stride", "path_count"))
def hard_routing_forward(layer_input, labels, temperature, balance_coefficient,
                         params, *, avg_pool_stride, path_count):
    # labels / balance_coefficient feed only auxiliary losses; temperature is argmax-invariant.
    del labels, balance_coefficient, temperature

    B, C, H, W = layer_input.shape
    s = avg_pool_stride
    F = params["w1"].shape[1]
    d_raw = C * H * W

    # bf16 matmul operands (f32 accumulation in-kernel). In a real pipeline the upstream layer
    # hands us bf16 activations and this cast fuses away; it is explicit here for self-containment.
    w1e = _expand_w1(params["w1"], C, H // s, W // s, s).astype(jnp.bfloat16)
    x_flat = layer_input.reshape(B, d_raw).astype(jnp.bfloat16)   # contiguous NCHW reshape

    vmem_limit = _vmem_limit_bytes()
    tile_b = _pick_tile_b(B, d_raw, F, path_count, budget_bytes=int(vmem_limit * 0.85))
    b_pad = _round_up(B, tile_b)
    n_pad = b_pad - B
    nb = b_pad // tile_b
    if n_pad:
        x_flat = jnp.pad(x_flat, ((0, n_pad), (0, 0)))            # zero rows, masked from stats

    kernel = functools.partial(fused_routing_kernel, tile_b=tile_b, batch=B,
                               n_pad=n_pad, path_count=path_count)

    out_pad = pl.pallas_call(
        kernel,
        out_shape=jax.ShapeDtypeStruct((b_pad, path_count), jnp.float32),
        grid=(2, nb),                                              # (phase, batch tile)
        in_specs=[
            # x: tile i in phase 0; pinned to block 0 in phase 1 (no re-fetch after one tile).
            # If profiling shows exposed DMA, sweep pipeline_mode=pl.Buffered(3) here.
            pl.BlockSpec((tile_b, d_raw), lambda p, i: (i * (1 - p), 0)),
            pl.BlockSpec((d_raw, F), lambda p, i: (0, 0)),
            pl.BlockSpec((1, F), lambda p, i: (0, 0)),
            pl.BlockSpec((1, F), lambda p, i: (0, 0)),
            pl.BlockSpec((1, F), lambda p, i: (0, 0)),
            pl.BlockSpec((F, path_count), lambda p, i: (0, 0)),
            pl.BlockSpec((1, path_count), lambda p, i: (0, 0)),
        ],
        # Output pinned to block 0 in phase 0 (never written there), tile i in phase 1.
        out_specs=pl.BlockSpec((tile_b, path_count), lambda p, i: (i * p, 0)),
        scratch_shapes=[
            pltpu.VMEM((b_pad, F), jnp.float32),   # h (fc1 output), resident across phases
            pltpu.VMEM((1, F), jnp.float32),       # batch sum accumulator
            pltpu.VMEM((1, F), jnp.float32),       # folded BN scale
            pltpu.VMEM((1, F), jnp.float32),       # folded BN shift
        ],
        compiler_params=pltpu.CompilerParams(
            dimension_semantics=("arbitrary", "arbitrary"),
            vmem_limit_bytes=vmem_limit),
    )(x_flat, w1e, params["b1"], params["gamma"], params["beta"],
      params["w2"], params["b2"])

    return out_pad[:B]


# --------------------------------------------------------------------------------------
# References for the self-test.
# --------------------------------------------------------------------------------------
def reference_activations_f32(layer_input, params, avg_pool_stride):
    """Pure-f32 pure-JAX replica of the PyTorch forward (up to the argmax-invariant softmax)."""
    x = layer_input.astype(jnp.float32)
    B, C, H, W = x.shape
    s = avg_pool_stride
    pooled = x.reshape(B, C, H // s, s, W // s, s).mean(axis=(3, 5))
    flat = pooled.reshape(B, -1)
    h = flat @ params["w1"] + params["b1"]
    mu = h.mean(axis=0, keepdims=True)
    var = ((h - mu) ** 2).mean(axis=0, keepdims=True)
    h = (h - mu) * jax.lax.rsqrt(var + _BN_EPS) * params["gamma"] + params["beta"]
    return h @ params["w2"] + params["b2"]


def reference_activations_kernelprec(layer_input, params, avg_pool_stride):
    """Same math/precision path as the kernel (pool folded into a bf16 fc1 matmul)."""
    x = layer_input.astype(jnp.float32)
    B, C, H, W = x.shape
    s = avg_pool_stride
    w1e = _expand_w1(params["w1"], C, H // s, W // s, s)
    h = jnp.dot(x.reshape(B, -1).astype(jnp.bfloat16), w1e.astype(jnp.bfloat16),
                preferred_element_type=jnp.float32) + params["b1"]
    mu = h.mean(axis=0, keepdims=True)
    var = ((h - mu) ** 2).mean(axis=0, keepdims=True)
    h = (h - mu) * jax.lax.rsqrt(var + _BN_EPS) * params["gamma"] + params["beta"]
    return jnp.dot(h, params["w2"], preferred_element_type=jnp.float32) + params["b2"]


def _assert_routing_matches(out_onehot, ref_act, tie_tol, name):
    """Routing must match the reference argmax on every row that is not a near-tie."""
    out_idx = np.argmax(out_onehot, axis=1)
    ref_idx = np.argmax(ref_act, axis=1)
    diff = out_idx != ref_idx
    if np.any(diff):
        srt = np.sort(ref_act[diff], axis=1)
        gap = srt[:, -1] - srt[:, -2]
        if not np.all(gap < tie_tol):
            raise AssertionError(
                f"{name}: routing mismatch on {int(np.sum(gap >= tie_tol))} non-tie rows "
                f"(max activation gap {float(gap.max()):.3e})")


if __name__ == "__main__":
    # Small, module-consistent shapes.
    batch = 8
    input_feature_map_count = 4     # C
    input_feature_map_size = 16     # H = W
    avg_pool_stride = 2
    feature_dim = 32
    path_count = 4
    class_count = 10                # stored by the module; unused in forward
    linear_in_dim = int(input_feature_map_count *
                        (input_feature_map_size // avg_pool_stride) ** 2)  # 256

    key = jax.random.PRNGKey(0)
    kx, kl, kp = jax.random.split(key, 3)
    layer_input = jax.random.normal(
        kx, (batch, input_feature_map_count,
             input_feature_map_size, input_feature_map_size), jnp.float32)
    labels = jax.random.randint(kl, (batch,), 0, class_count)
    temperature = 1.5
    balance_coefficient = 1.0

    params = init_params(kp, feature_dim, path_count, linear_in_dim)

    out = hard_routing_forward(layer_input, labels, temperature, balance_coefficient,
                               params, avg_pool_stride=avg_pool_stride,
                               path_count=path_count)
    out = jax.block_until_ready(out)
    out_np = np.asarray(out)

    assert out_np.shape == (batch, path_count)
    assert np.all((out_np == 0.0) | (out_np == 1.0))
    assert np.all(out_np.sum(axis=1) == 1.0)

    # (a) precision-matched reference (bf16 fc1 operands, identical math path to the kernel):
    #     must agree except on sub-1e-4 activation ties (accumulation-order noise only).
    act_pm = np.asarray(reference_activations_kernelprec(layer_input, params, avg_pool_stride))
    _assert_routing_matches(out_np, act_pm, tie_tol=1e-4, name="precision-matched reference")

    # (b) module-faithful pure-f32 reference: bf16 fc1 operands may only flip near-ties.
    act_f32 = np.asarray(reference_activations_f32(layer_input, params, avg_pool_stride))
    _assert_routing_matches(out_np, act_f32, tie_tol=5e-2, name="f32 module reference")

    print("KERNEL_OK")
</pallas_src>

<mosaic_0001>
module attributes {stable_mosaic.version = 11 : i64} {
  func.func @fused_routing_kernel(%arg0: i32, %arg1: i32, %arg2: memref<16x1024xbf16, #tpu.memory_space<vmem>>, %arg3: memref<1024x32xbf16, #tpu.memory_space<vmem>>, %arg4: memref<1x32xf32, #tpu.memory_space<vmem>>, %arg5: memref<1x32xf32, #tpu.memory_space<vmem>>, %arg6: memref<1x32xf32, #tpu.memory_space<vmem>>, %arg7: memref<32x4xf32, #tpu.memory_space<vmem>>, %arg8: memref<1x4xf32, #tpu.memory_space<vmem>>, %arg9: memref<16x4xf32, #tpu.memory_space<vmem>>, %arg10: memref<16x32xf32, #tpu.memory_space<vmem>>, %arg11: memref<1x32xf32, #tpu.memory_space<vmem>>, %arg12: memref<1x32xf32, #tpu.memory_space<vmem>>, %arg13: memref<1x32xf32, #tpu.memory_space<vmem>>) attributes {dimension_semantics = [#tpu.dimension_semantics<arbitrary>, #tpu.dimension_semantics<arbitrary>], iteration_bounds = array<i64: 2, 1>, scalar_prefetch = 0 : i64, scratch_operands = 4 : i64, tpu.core_type = #tpu.core_type<tc>, window_params = [{transform_indices = @transform_0, window_bounds = array<i64: 16, 1024>}, {pipeline_mode = #tpu.pipeline_mode<synchronous>, transform_indices = @transform_1, window_bounds = array<i64: 1024, 32>}, {pipeline_mode = #tpu.pipeline_mode<synchronous>, transform_indices = @transform_2, window_bounds = array<i64: 1, 32>}, {pipeline_mode = #tpu.pipeline_mode<synchronous>, transform_indices = @transform_3, window_bounds = array<i64: 1, 32>}, {pipeline_mode = #tpu.pipeline_mode<synchronous>, transform_indices = @transform_4, window_bounds = array<i64: 1, 32>}, {pipeline_mode = #tpu.pipeline_mode<synchronous>, transform_indices = @transform_5, window_bounds = array<i64: 32, 4>}, {pipeline_mode = #tpu.pipeline_mode<synchronous>, transform_indices = @transform_6, window_bounds = array<i64: 1, 4>}, {transform_indices = @transform_7, window_bounds = array<i64: 16, 4>}]} {
    %c16_i32 = arith.constant 16 : i32
    %0 = arith.muli %arg1, %c16_i32 : i32
    %1 = tpu.assume_multiple %0, 16 : i32
    %c0_i32 = arith.constant 0 : i32
    %2 = arith.cmpi eq, %arg0, %c0_i32 : i32
    %c0_i32_0 = arith.constant 0 : i32
    %3 = arith.cmpi eq, %arg1, %c0_i32_0 : i32
    %4 = arith.andi %2, %3 : i1
    %5 = arith.extui %4 : i1 to i32
    %c0_i32_1 = arith.constant 0 : i32
    %6 = arith.cmpi ne, %5, %c0_i32_1 : i32
    scf.if %6 {
      %cst = arith.constant 0.000000e+00 : f32
      %18 = vector.broadcast %cst : f32 to vector<1x32xf32>
      %c0 = arith.constant 0 : index
      %c0_8 = arith.constant 0 : index
      %19 = vector.load %arg11[%c0, %c0_8] : memref<1x32xf32, #tpu.memory_space<vmem>>, vector<1x32xf32>
      tpu.vector_store %arg11[%c0, %c0_8], %18 {strides = array<i32>} : memref<1x32xf32, #tpu.memory_space<vmem>>, vector<1x32xf32>,
    } else {
    }
    %c0_i32_2 = arith.constant 0 : i32
    %7 = arith.cmpi eq, %arg0, %c0_i32_2 : i32
    %8 = arith.extui %7 : i1 to i32
    %c0_i32_3 = arith.constant 0 : i32
    %9 = arith.cmpi ne, %8, %c0_i32_3 : i32
    scf.if %9 {
      %c0 = arith.constant 0 : index
      %c0_8 = arith.constant 0 : index
      %18 = vector.load %arg2[%c0, %c0_8] : memref<16x1024xbf16, #tpu.memory_space<vmem>>, vector<16x1024xbf16>
      %c0_9 = arith.constant 0 : index
      %c0_10 = arith.constant 0 : index
      %19 = vector.load %arg3[%c0_9, %c0_10] : memref<1024x32xbf16, #tpu.memory_space<vmem>>, vector<1024x32xbf16>
      %cst = arith.constant dense<0.000000e+00> : vector<16x32xf32>
      %20 = tpu.matmul %18, %19, %cst {dimension_numbers = #tpu.dot_dimension_numbers<[1], [0], [0], [1], [0, 0, 1, 1], [], []>} : vector<16x1024xbf16>, vector<1024x32xbf16>, vector<16x32xf32> -> vector<16x32xf32>
      %c0_11 = arith.constant 0 : index
      %c0_12 = arith.constant 0 : index
      %21 = vector.load %arg4[%c0_11, %c0_12] : memref<1x32xf32, #tpu.memory_space<vmem>>, vector<1x32xf32>
      %22 = vector.broadcast %21 : vector<1x32xf32> to vector<16x32xf32>
      %23 = arith.addf %20, %22 : vector<16x32xf32>
      %c16_i32_13 = arith.constant 16 : i32
      %24 = arith.muli %arg1, %c16_i32_13 : i32
      %25 = tpu.iota {dimensions = array<i32: 0>} : vector<16x32xi32>
      %26 = vector.broadcast %24 : i32 to vector<16x32xi32>
      %27 = arith.addi %26, %25 : vector<16x32xi32>
      %c8_i32 = arith.constant 8 : i32
      %28 = vector.broadcast %c8_i32 : i32 to vector<16x32xi32>
      %29 = arith.cmpi slt, %27, %28 : vector<16x32xi32>
      %cst_14 = arith.constant 0.000000e+00 : f32
      %30 = vector.broadcast %cst_14 : f32 to vector<16x32xf32>
      %31 = arith.select %29, %23, %30 : vector<16x32xi1>, vector<16x32xf32>
      %32 = arith.index_cast %1 : i32 to index
      %c0_15 = arith.constant 0 : index
      %33 = vector.load %arg10[%32, %c0_15] : memref<16x32xf32, #tpu.memory_space<vmem>>, vector<16x32xf32>
      tpu.vector_store %arg10[%32, %c0_15], %31 {strides = array<i32>} : memref<16x32xf32, #tpu.memory_space<vmem>>, vector<16x32xf32>,
      %c0_16 = arith.constant 0 : index
      %c0_17 = arith.constant 0 : index
      %34 = vector.load %arg11[%c0_16, %c0_17] : memref<1x32xf32, #tpu.memory_space<vmem>>, vector<1x32xf32>
      %cst_18 = arith.constant dense<0.000000e+00> : vector<32xf32>
      %35 = vector.multi_reduction <add>, %31, %cst_18 [0] : vector<16x32xf32> to vector<32xf32>
      %36 = vector.shape_cast %35 : vector<32xf32> to vector<1x32xf32>
      %37 = arith.addf %34, %36 : vector<1x32xf32>
      %c0_19 = arith.constant 0 : index
      %c0_20 = arith.constant 0 : index
      %38 = vector.load %arg11[%c0_19, %c0_20] : memref<1x32xf32, #tpu.memory_space<vmem>>, vector<1x32xf32>
      tpu.vector_store %arg11[%c0_19, %c0_20], %37 {strides = array<i32>} : memref<1x32xf32, #tpu.memory_space<vmem>>, vector<1x32xf32>,
    } else {
    }
    %c1_i32 = arith.constant 1 : i32
    %10 = arith.cmpi eq, %arg0, %c1_i32 : i32
    %c0_i32_4 = arith.constant 0 : i32
    %11 = arith.cmpi eq, %arg1, %c0_i32_4 : i32
    %12 = arith.andi %10, %11 : i1
    %13 = arith.extui %12 : i1 to i32
    %c0_i32_5 = arith.constant 0 : i32
    %14 = arith.cmpi ne, %13, %c0_i32_5 : i32
    scf.if %14 {
      %c0 = arith.constant 0 : index
      %c0_8 = arith.constant 0 : index
      %18 = vector.load %arg11[%c0, %c0_8] : memref<1x32xf32, #tpu.memory_space<vmem>>, vector<1x32xf32>
      %cst = arith.constant 1.250000e-01 : f32
      %19 = vector.broadcast %cst : f32 to vector<1x32xf32>
      %20 = arith.mulf %18, %19 : vector<1x32xf32>
      %c0_9 = arith.constant 0 : index
      %c0_10 = arith.constant 0 : index
      %21 = vector.load %arg10[%c0_9, %c0_10] : memref<16x32xf32, #tpu.memory_space<vmem>>, vector<16x32xf32>
      %22 = vector.broadcast %20 : vector<1x32xf32> to vector<16x32xf32>
      %23 = arith.subf %21, %22 : vector<16x32xf32>
      %24 = arith.mulf %23, %23 : vector<16x32xf32>
      %cst_11 = arith.constant dense<0.000000e+00> : vector<32xf32>
      %25 = vector.multi_reduction <add>, %24, %cst_11 [0] : vector<16x32xf32> to vector<32xf32>
      %26 = vector.shape_cast %25 : vector<32xf32> to vector<1x32xf32>
      %27 = arith.mulf %20, %20 : vector<1x32xf32>
      %cst_12 = arith.constant 8.000000e+00 : f32
      %28 = vector.broadcast %cst_12 : f32 to vector<1x32xf32>
      %29 = arith.mulf %28, %27 : vector<1x32xf32>
      %30 = arith.subf %26, %29 : vector<1x32xf32>
      %cst_13 = arith.constant 1.250000e-01 : f32
      %31 = vector.broadcast %cst_13 : f32 to vector<1x32xf32>
      %32 = arith.mulf %30, %31 : vector<1x32xf32>
      %c0_14 = arith.constant 0 : index
      %c0_15 = arith.constant 0 : index
      %33 = vector.load %arg5[%c0_14, %c0_15] : memref<1x32xf32, #tpu.memory_space<vmem>>, vector<1x32xf32>
      %cst_16 = arith.constant 9.99999974E-6 : f32
      %34 = vector.broadcast %cst_16 : f32 to vector<1x32xf32>
      %35 = arith.addf %32, %34 : vector<1x32xf32>
      %36 = math.rsqrt %35 : vector<1x32xf32>
      %37 = arith.mulf %33, %36 : vector<1x32xf32>
      %c0_17 = arith.constant 0 : index
      %c0_18 = arith.constant 0 : index
      %38 = vector.load %arg12[%c0_17, %c0_18] : memref<1x32xf32, #tpu.memory_space<vmem>>, vector<1x32xf32>
      tpu.vector_store %arg12[%c0_17, %c0_18], %37 {strides = array<i32>} : memref<1x32xf32, #tpu.memory_space<vmem>>, vector<1x32xf32>,
      %c0_19 = arith.constant 0 : index
      %c0_20 = arith.constant 0 : index
      %39 = vector.load %arg6[%c0_19, %c0_20] : memref<1x32xf32, #tpu.memory_space<vmem>>, vector<1x32xf32>
      %40 = arith.mulf %20, %37 : vector<1x32xf32>
      %41 = arith.subf %39, %40 : vector<1x32xf32>
      %c0_21 = arith.constant 0 : index
      %c0_22 = arith.constant 0 : index
      %42 = vector.load %arg13[%c0_21, %c0_22] : memref<1x32xf32, #tpu.memory_space<vmem>>, vector<1x32xf32>
      tpu.vector_store %arg13[%c0_21, %c0_22], %41 {strides = array<i32>} : memref<1x32xf32, #tpu.memory_space<vmem>>, vector<1x32xf32>,
    } else {
    }
    %c1_i32_6 = arith.constant 1 : i32
    %15 = arith.cmpi eq, %arg0, %c1_i32_6 : i32
    %16 = arith.extui %15 : i1 to i32
    %c0_i32_7 = arith.constant 0 : i32
    %17 = arith.cmpi ne, %16, %c0_i32_7 : i32
    scf.if %17 {
      %18 = arith.index_cast %1 : i32 to index
      %c0 = arith.constant 0 : index
      %19 = vector.load %arg10[%18, %c0] : memref<16x32xf32, #tpu.memory_space<vmem>>, vector<16x32xf32>
      %c0_8 = arith.constant 0 : index
      %c0_9 = arith.constant 0 : index
      %20 = vector.load %arg12[%c0_8, %c0_9] : memref<1x32xf32, #tpu.memory_space<vmem>>, vector<1x32xf32>
      %21 = vector.broadcast %20 : vector<1x32xf32> to vector<16x32xf32>
      %22 = arith.mulf %19, %21 : vector<16x32xf32>
      %c0_10 = arith.constant 0 : index
      %c0_11 = arith.constant 0 : index
      %23 = vector.load %arg13[%c0_10, %c0_11] : memref<1x32xf32, #tpu.memory_space<vmem>>, vector<1x32xf32>
      %24 = vector.broadcast %23 : vector<1x32xf32> to vector<16x32xf32>
      %25 = arith.addf %22, %24 : vector<16x32xf32>
      %c0_12 = arith.constant 0 : index
      %c0_13 = arith.constant 0 : index
      %26 = vector.load %arg7[%c0_12, %c0_13] : memref<32x4xf32, #tpu.memory_space<vmem>>, vector<32x4xf32>
      %cst = arith.constant dense<0.000000e+00> : vector<16x4xf32>
      %27 = tpu.matmul %25, %26, %cst {dimension_numbers = #tpu.dot_dimension_numbers<[1], [0], [0], [1], [0, 0, 1, 1], [], []>} : vector<16x32xf32>, vector<32x4xf32>, vector<16x4xf32> -> vector<16x4xf32>
      %c0_14 = arith.constant 0 : index
      %c0_15 = arith.constant 0 : index
      %28 = vector.load %arg8[%c0_14, %c0_15] : memref<1x4xf32, #tpu.memory_space<vmem>>, vector<1x4xf32>
      %29 = vector.broadcast %28 : vector<1x4xf32> to vector<16x4xf32>
      %30 = arith.addf %27, %29 : vector<16x4xf32>
      %31 = tpu.iota {dimensions = array<i32: 1>} : vector<16x4xi32>
      %cst_16 = arith.constant dense<0xFF800000> : vector<16xf32>
      %32 = vector.multi_reduction <maximumf>, %30, %cst_16 [1] : vector<16x4xf32> to vector<16xf32>
      %33 = vector.shape_cast %32 : vector<16xf32> to vector<16x1xf32>
      %34 = vector.broadcast %33 : vector<16x1xf32> to vector<16x4xf32>
      %35 = arith.cmpf oeq, %30, %34 : vector<16x4xf32>
      %c4_i32 = arith.constant 4 : i32
      %36 = vector.broadcast %c4_i32 : i32 to vector<16x4xi32>
      %37 = arith.select %35, %31, %36 : vector<16x4xi1>, vector<16x4xi32>
      %cst_17 = arith.constant dense<2147483647> : vector<16xi32>
      %38 = vector.multi_reduction <minsi>, %37, %cst_17 [1] : vector<16x4xi32> to vector<16xi32>
      %39 = vector.shape_cast %38 : vector<16xi32> to vector<16x1xi32>
      %40 = vector.broadcast %39 : vector<16x1xi32> to vector<16x4xi32>
      %41 = arith.cmpi eq, %31, %40 : vector<16x4xi32>
      %42 = arith.extui %41 : vector<16x4xi1> to vector<16x4xi32>
      %43 = arith.sitofp %42 : vector<16x4xi32> to vector<16x4xf32>
      %c0_18 = arith.constant 0 : index
      %c0_19 = arith.constant 0 : index
      %44 = vector.load %arg9[%c0_18, %c0_19] : memref<16x4xf32, #tpu.memory_space<vmem>>, vector<16x4xf32>
      tpu.vector_store %arg9[%c0_18, %c0_19], %43 {strides = array<i32>} : memref<16x4xf32, #tpu.memory_space<vmem>>, vector<16x4xf32>,
    } else {
    }
    return
  }
  func.func @transform_0(%arg0: i32, %arg1: i32) -> (i32, i32) {
    %c1_i32 = arith.constant 1 : i32
    %0 = arith.subi %c1_i32, %arg0 : i32
    %1 = arith.muli %arg1, %0 : i32
    %c0_i32 = arith.constant 0 : i32
    %c0_i32_0 = arith.constant 0 : i32
    return %1, %c0_i32 : i32, i32
  }
  func.func @transform_1(%arg0: i32, %arg1: i32) -> (i32, i32) {
    %c0_i32 = arith.constant 0 : i32
    %c0_i32_0 = arith.constant 0 : i32
    %c0_i32_1 = arith.constant 0 : i32
    return %c0_i32, %c0_i32_0 : i32, i32
  }
  func.func @transform_2(%arg0: i32, %arg1: i32) -> (i32, i32) {
    %c0_i32 = arith.constant 0 : i32
    %c0_i32_0 = arith.constant 0 : i32
    %c0_i32_1 = arith.constant 0 : i32
    return %c0_i32, %c0_i32_0 : i32, i32
  }
  func.func @transform_3(%arg0: i32, %arg1: i32) -> (i32, i32) {
    %c0_i32 = arith.constant 0 : i32
    %c0_i32_0 = arith.constant 0 : i32
    %c0_i32_1 = arith.constant 0 : i32
    return %c0_i32, %c0_i32_0 : i32, i32
  }
  func.func @transform_4(%arg0: i32, %arg1: i32) -> (i32, i32) {
    %c0_i32 = arith.constant 0 : i32
    %c0_i32_0 = arith.constant 0 : i32
    %c0_i32_1 = arith.constant 0 : i32
    return %c0_i32, %c0_i32_0 : i32, i32
  }
  func.func @transform_5(%arg0: i32, %arg1: i32) -> (i32, i32) {
    %c0_i32 = arith.constant 0 : i32
    %c0_i32_0 = arith.constant 0 : i32
    %c0_i32_1 = arith.constant 0 : i32
    return %c0_i32, %c0_i32_0 : i32, i32
  }
  func.func @transform_6(%arg0: i32, %arg1: i32) -> (i32, i32) {
    %c0_i32 = arith.constant 0 : i32
    %c0_i32_0 = arith.constant 0 : i32
    %c0_i32_1 = arith.constant 0 : i32
    return %c0_i32, %c0_i32_0 : i32, i32
  }
  func.func @transform_7(%arg0: i32, %arg1: i32) -> (i32, i32) {
    %0 = arith.muli %arg1, %arg0 : i32
    %c0_i32 = arith.constant 0 : i32
    %c0_i32_0 = arith.constant 0 : i32
    return %0, %c0_i32 : i32, i32
  }
}

</mosaic_0001>

<llo_original>
// kernel: hard_routing_forward.1
$region0: #{hard_routing_forward.1}
  #allocation0 [shape = 'u32[]', space=smem, size = 0x4, offset = 0x4, fixed_abs, tag = 'smem constant byte address 0x4 - core index']
  #allocation1 [shape = 'u32[144,128]{1,0:T(1,128)}', space=vmem, size = 0x12000, scoped, tag = 'internal scratch']
  #allocation2 [shape = 'f32[16,32]{1,0:T(8,128)}', space=vmem, size = 0x2000, scoped, tag = 'scratch operand']
  #allocation3 [shape = 'f32[1,32]{1,0:T(1,128)}', space=vmem, size = 0x200, scoped, tag = 'scratch operand']
  #allocation4 [shape = 'f32[1,32]{1,0:T(1,128)}', space=vmem, size = 0x200, scoped, tag = 'scratch operand']
  #allocation5 [shape = 'f32[1,32]{1,0:T(1,128)}', space=vmem, size = 0x200, scoped, tag = 'scratch operand']
  %s0 = inlined_call_operand.vmem [shape: bf16[16,1024], index: 0, kind: input, shape index: {}]
  %s1 = inlined_call_operand.vmem [shape: bf16[1024,32], index: 1, kind: input, shape index: {}]
  %s2 = inlined_call_operand.vmem [shape: f32[1,32], index: 2, kind: input, shape index: {}]
  %s3 = inlined_call_operand.vmem [shape: f32[1,32], index: 3, kind: input, shape index: {}]
  %s4 = inlined_call_operand.vmem [shape: f32[1,32], index: 4, kind: input, shape index: {}]
  %s5 = inlined_call_operand.vmem [shape: f32[32,4], index: 5, kind: input, shape index: {}]
  %s6 = inlined_call_operand.vmem [shape: f32[1,4], index: 6, kind: input, shape index: {}]
  %s7 = inlined_call_operand.vmem [shape: f32[16,4], index: 7, kind: output, shape index: {}]
  %s8 = sld [smem:[#allocation0]]
  $region77: #{hard_routing_forward.1} parent=0
    _
  %s10 = ssub.s32 1, %s8
  %s11 = scalar_select 0, %s10, %s8
  loop: start=0, step=1, limit=4
  $region2: #{hard_routing_forward.1} parent=0 // loop_pre_header
    _
  $region3: #{hard_routing_forward.1} parent=0 // loop_header
    %s13 = sphi 0, %s17
    %p14 = scmp.ge.s32.totalorder %s13, 4
    %s20 = sphi 0, %s32
    %s21 = sphi 0, %s28
    %s22 = sphi 0, %s20
    %s23 = sphi 0, %s21
    %s24 = sphi 0, %s22
    %s25 = sphi 0, %s23
    %s39 = sphi 0, %s41
    %s42 = sphi 0, %s39
    %s43 = sphi 0, %s42
    %s59 = sphi 0, %s43
    %s63 = sphi 0, %s63
    %s65 = sphi 0, %s63
    %s66 = sphi 0, %s65
    %s80 = sphi 0, %s66
    %s84 = sphi 0, %s84
    %s86 = sphi 0, %s84
    %s87 = sphi 0, %s86
    %s101 = sphi 0, %s87
    %s105 = sphi 0, %s105
    %s107 = sphi 0, %s105
    %s108 = sphi 0, %s107
    %s122 = sphi 0, %s108
    %s126 = sphi 0, %s126
    %s128 = sphi 0, %s126
    %s129 = sphi 0, %s128
    %s143 = sphi 0, %s129
    %s147 = sphi 0, %s147
    %s149 = sphi 0, %s147
    %s150 = sphi 0, %s149
    %s164 = sphi 0, %s150
    %s168 = sphi 0, %s168
    %s170 = sphi 0, %s168
    %s171 = sphi 0, %s170
    %s185 = sphi 0, %s171
    %s193 = sphi 0, %s195
    %s196 = sphi 0, %s193
    %s197 = sphi 0, %s196
    %s213 = sphi 0, %s197
  $region4: #{hard_routing_forward.1} parent=0 // loop_header_branch
    %16 = sbr.rel (%p14) target = $region8
  $region5: #{hard_routing_forward.1} parent=0 // loop_body
    %s18 = ssub.s32 %s13, 1
    %s19 = ssub.s32 %s13, 2
    %s26 = sadd.s32 1, %s21
    %p27 = scmp.ge.s32.totalorder %s26, 1
    %s28 = scalar_select %p27, 0, %s26
    %s29 = sadd.s32 1, %s20
    %s30 = scalar_select %p27, %s29, %s20
    %p31 = scmp.ge.s32.totalorder %s30, 2
    %s32 = scalar_select %p31, 0, %s30
    %s33 = ssub.s32 1, %s20
    %s34 = smul.u32 %s21, %s33
    %s35 = ssub.s32 1, %s32
    %s36 = smul.u32 %s28, %s35
    %s37 = ssub.s32 %s34, %s36
    %p38 = scmp.eq.s32.totalorder %s37, 0
    %s40 = sadd.s32 %s39, 1
    %s41 = scalar_select %p38, %s39, %s40
    %p44 = pneg %p38
    %p45 = scmp.eq.s32.totalorder %s13, 1
    %p46 = por %p44, %p45
    %p47 = scmp.ne.s32.totalorder %s39, %s42
    %p48 = scmp.eq.s32.totalorder %s13, 0
    %p49 = por %p47, %p48
    %p50 = scmp.ne.s32.totalorder %s39, %s42
    %p51 = scmp.eq.s32.totalorder %s18, 1
    %p52 = por %p50, %p51
    %p53 = scmp.ne.s32.totalorder %s42, %s43
    %p54 = scmp.eq.s32.totalorder %s18, 0
    %p55 = por %p53, %p54
    %p56 = scmp.ne.s32.totalorder %s42, %s43
    %p57 = scmp.eq.s32.totalorder %s19, 1
    %p58 = por %p56, %p57
    %p60 = scmp.ne.s32.totalorder %s43, %s59
    %p61 = scmp.eq.s32.totalorder %s19, 0
    %p62 = por %p60, %p61
    %s64 = sadd.s32 %s63, 1
    %p67 = scmp.eq.s32.totalorder %s13, 1
    %p68 = scmp.ne.s32.totalorder %s63, %s65
    %p69 = scmp.eq.s32.totalorder %s13, 0
    %p70 = por %p68, %p69
    %p71 = scmp.ne.s32.totalorder %s63, %s65
    %p72 = scmp.eq.s32.totalorder %s18, 1
    %p73 = por %p71, %p72
    %p74 = scmp.ne.s32.totalorder %s65, %s66
    %p75 = scmp.eq.s32.totalorder %s18, 0
    %p76 = por %p74, %p75
    %p77 = scmp.ne.s32.totalorder %s65, %s66
    %p78 = scmp.eq.s32.totalorder %s19, 1
    %p79 = por %p77, %p78
    %p81 = scmp.ne.s32.totalorder %s66, %s80
    %p82 = scmp.eq.s32.totalorder %s19, 0
    %p83 = por %p81, %p82
    %s85 = sadd.s32 %s84, 1
    %p88 = scmp.eq.s32.totalorder %s13, 1
    %p89 = scmp.ne.s32.totalorder %s84, %s86
    %p90 = scmp.eq.s32.totalorder %s13, 0
    %p91 = por %p89, %p90
    %p92 = scmp.ne.s32.totalorder %s84, %s86
    %p93 = scmp.eq.s32.totalorder %s18, 1
    %p94 = por %p92, %p93
    %p95 = scmp.ne.s32.totalorder %s86, %s87
    %p96 = scmp.eq.s32.totalorder %s18, 0
    %p97 = por %p95, %p96
    %p98 = scmp.ne.s32.totalorder %s86, %s87
    %p99 = scmp.eq.s32.totalorder %s19, 1
    %p100 = por %p98, %p99
    %p102 = scmp.ne.s32.totalorder %s87, %s101
    %p103 = scmp.eq.s32.totalorder %s19, 0
    %p104 = por %p102, %p103
    %s106 = sadd.s32 %s105, 1
    %p109 = scmp.eq.s32.totalorder %s13, 1
    %p110 = scmp.ne.s32.totalorder %s105, %s107
    %p111 = scmp.eq.s32.totalorder %s13, 0
    %p112 = por %p110, %p111
    %p113 = scmp.ne.s32.totalorder %s105, %s107
    %p114 = scmp.eq.s32.totalorder %s18, 1
    %p115 = por %p113, %p114
    %p116 = scmp.ne.s32.totalorder %s107, %s108
    %p117 = scmp.eq.s32.totalorder %s18, 0
    %p118 = por %p116, %p117
    %p119 = scmp.ne.s32.totalorder %s107, %s108
    %p120 = scmp.eq.s32.totalorder %s19, 1
    %p121 = por %p119, %p120
    %p123 = scmp.ne.s32.totalorder %s108, %s122
    %p124 = scmp.eq.s32.totalorder %s19, 0
    %p125 = por %p123, %p124
    %s127 = sadd.s32 %s126, 1
    %p130 = scmp.eq.s32.totalorder %s13, 1
    %p131 = scmp.ne.s32.totalorder %s126, %s128
    %p132 = scmp.eq.s32.totalorder %s13, 0
    %p133 = por %p131, %p132
    %p134 = scmp.ne.s32.totalorder %s126, %s128
    %p135 = scmp.eq.s32.totalorder %s18, 1
    %p136 = por %p134, %p135
    %p137 = scmp.ne.s32.totalorder %s128, %s129
    %p138 = scmp.eq.s32.totalorder %s18, 0
    %p139 = por %p137, %p138
    %p140 = scmp.ne.s32.totalorder %s128, %s129
    %p141 = scmp.eq.s32.totalorder %s19, 1
    %p142 = por %p140, %p141
    %p144 = scmp.ne.s32.totalorder %s129, %s143
    %p145 = scmp.eq.s32.totalorder %s19, 0
    %p146 = por %p144, %p145
    %s148 = sadd.s32 %s147, 1
    %p151 = scmp.eq.s32.totalorder %s13, 1
    %p152 = scmp.ne.s32.totalorder %s147, %s149
    %p153 = scmp.eq.s32.totalorder %s13, 0
    %p154 = por %p152, %p153
    %p155 = scmp.ne.s32.totalorder %s147, %s149
    %p156 = scmp.eq.s32.totalorder %s18, 1
    %p157 = por %p155, %p156
    %p158 = scmp.ne.s32.totalorder %s149, %s150
    %p159 = scmp.eq.s32.totalorder %s18, 0
    %p160 = por %p158, %p159
    %p161 = scmp.ne.s32.totalorder %s149, %s150
    %p162 = scmp.eq.s32.totalorder %s19, 1
    %p163 = por %p161, %p162
    %p165 = scmp.ne.s32.totalorder %s150, %s164
    %p166 = scmp.eq.s32.totalorder %s19, 0
    %p167 = por %p165, %p166
    %s169 = sadd.s32 %s168, 1
    %p172 = scmp.eq.s32.totalorder %s13, 1
    %p173 = scmp.ne.s32.totalorder %s168, %s170
    %p174 = scmp.eq.s32.totalorder %s13, 0
    %p175 = por %p173, %p174
    %p176 = scmp.ne.s32.totalorder %s168, %s170
    %p177 = scmp.eq.s32.totalorder %s18, 1
    %p178 = por %p176, %p177
    %p179 = scmp.ne.s32.totalorder %s170, %s171
    %p180 = scmp.eq.s32.totalorder %s18, 0
    %p181 = por %p179, %p180
    %p182 = scmp.ne.s32.totalorder %s170, %s171
    %p183 = scmp.eq.s32.totalorder %s19, 1
    %p184 = por %p182, %p183
    %p186 = scmp.ne.s32.totalorder %s171, %s185
    %p187 = scmp.eq.s32.totalorder %s19, 0
    %p188 = por %p186, %p187
    %s189 = smul.u32 %s21, %s20
    %s190 = smul.u32 %s28, %s32
    %s191 = ssub.s32 %s189, %s190
    %p192 = scmp.eq.s32.totalorder %s191, 0
    %s194 = sadd.s32 %s193, 1
    %s195 = scalar_select %p192, %s193, %s194
    %p198 = pneg %p192
    %p199 = scmp.eq.s32.totalorder %s13, 1
    %p200 = por %p198, %p199
    %p201 = scmp.ne.s32.totalorder %s193, %s196
    %p202 = scmp.eq.s32.totalorder %s13, 0
    %p203 = por %p201, %p202
    %p204 = scmp.ne.s32.totalorder %s193, %s196
    %p205 = scmp.eq.s32.totalorder %s18, 1
    %p206 = por %p204, %p205
    %p207 = scmp.ne.s32.totalorder %s196, %s197
    %p208 = scmp.eq.s32.totalorder %s18, 0
    %p209 = por %p207, %p208
    %p210 = scmp.ne.s32.totalorder %s196, %s197
    %p211 = scmp.eq.s32.totalorder %s19, 1
    %p212 = por %p210, %p211
    %p214 = scmp.ne.s32.totalorder %s197, %s213
    %p215 = scmp.eq.s32.totalorder %s19, 0
    %p216 = por %p214, %p215
    %p217 = scmp.le.s32.totalorder 1, %s13
    %p218 = scmp.lt.s32.totalorder %s13, 3
    %p219 = pnand %p217, %p218
    %p220 = pneg %p219
    // Predicated region
    $region9: #{hard_routing_forward.1} parent=5 // pred_check
      _
    $region10: #{hard_routing_forward.1} parent=5 // pred_check_branch
      %222 = sbr.rel (%p219) target = $region12
    $region11: #{hard_routing_forward.1} parent=5 // pred_region
      %s223 = ssub.s32 %s13, 1
      // Predicated region
      $region13: #{hard_routing_forward.1} parent=11 // pred_check
        %p224 = pneg %p76
      $region14: #{hard_routing_forward.1} parent=11 // pred_check_branch
        %226 = sbr.rel (%p224) target = $region16
      $region15: #{hard_routing_forward.1} parent=11 // pred_region
        _
      $region16: #{hard_routing_forward.1} parent=11 // pred_fallthru
        _
      // Predicated region
      $region17: #{hard_routing_forward.1} parent=11 // pred_check
        %p227 = pneg %p97
      $region18: #{hard_routing_forward.1} parent=11 // pred_check_branch
        %229 = sbr.rel (%p227) target = $region20
      $region19: #{hard_routing_forward.1} parent=11 // pred_region
        _
      $region20: #{hard_routing_forward.1} parent=11 // pred_fallthru
        _
      // Predicated region
      $region21: #{hard_routing_forward.1} parent=11 // pred_check
        %p230 = pneg %p118
      $region22: #{hard_routing_forward.1} parent=11 // pred_check_branch
        %232 = sbr.rel (%p230) target = $region24
      $region23: #{hard_routing_forward.1} parent=11 // pred_region
        _
      $region24: #{hard_routing_forward.1} parent=11 // pred_fallthru
        _
      // Predicated region
      $region25: #{hard_routing_forward.1} parent=11 // pred_check
        %p233 = pneg %p139
      $region26: #{hard_routing_forward.1} parent=11 // pred_check_branch
        %235 = sbr.rel (%p233) target = $region28
      $region27: #{hard_routing_forward.1} parent=11 // pred_region
        _
      $region28: #{hard_routing_forward.1} parent=11 // pred_fallthru
        _
      // Predicated region
      $region29: #{hard_routing_forward.1} parent=11 // pred_check
        %p236 = pneg %p160
      $region30: #{hard_routing_forward.1} parent=11 // pred_check_branch
        %238 = sbr.rel (%p236) target = $region32
      $region31: #{hard_routing_forward.1} parent=11 // pred_region
        _
      $region32: #{hard_routing_forward.1} parent=11 // pred_fallthru
        _
      // Predicated region
      $region33: #{hard_routing_forward.1} parent=11 // pred_check
        %p239 = pneg %p181
      $region34: #{hard_routing_forward.1} parent=11 // pred_check_branch
        %241 = sbr.rel (%p239) target = $region36
      $region35: #{hard_routing_forward.1} parent=11 // pred_region
        _
      $region36: #{hard_routing_forward.1} parent=11 // pred_fallthru
        _
    $region12: #{hard_routing_forward.1} parent=5 // pred_fallthru
      _
    %p242 = scmp.lt.s32.totalorder %s13, 2
    // Predicated region
    $region37: #{hard_routing_forward.1} parent=5 // pred_check
      %p243 = pneg %p242
    $region38: #{hard_routing_forward.1} parent=5 // pred_check_branch
      %245 = sbr.rel (%p243) target = $region40
    $region39: #{hard_routing_forward.1} parent=5 // pred_region
      // Predicated region
      $region41: #{hard_routing_forward.1} parent=39 // pred_check
        %p246 = pneg %p49
      $region42: #{hard_routing_forward.1} parent=39 // pred_check_branch
        %248 = sbr.rel (%p246) target = $region44
      $region43: #{hard_routing_forward.1} parent=39 // pred_region
        %s249 = ssub.s32 1, %s20
        %s250 = smul.u32 %s21, %s249
        %s251 = smul.u32 2, %s250
        %p252 = scmp.lt.s32.totalorder %s251, 1
        %s253 = scalar_select %p252, %s251, 1
        %s254 = smul.addr %s253, 8
        %s255 = smul.addr %s254, 4
        %s256 = scalar_lea.vmem %s0, %s255
        %s257 = ssub.s32 1, %s20
        %s258 = smul.u32 %s21, %s257
        %s259 = smul.u32 2, %s258
      $region44: #{hard_routing_forward.1} parent=39 // pred_fallthru
        _
    $region40: #{hard_routing_forward.1} parent=5 // pred_fallthru
      _
    %p260 = scmp.le.s32.totalorder 1, %s13
    %p261 = scmp.lt.s32.totalorder %s13, 3
    %p262 = pnand %p260, %p261
    %p263 = pneg %p262
    // Predicated region
    $region45: #{hard_routing_forward.1} parent=5 // pred_check
      _
    $region46: #{hard_routing_forward.1} parent=5 // pred_check_branch
      %265 = sbr.rel (%p262) target = $region48
    $region47: #{hard_routing_forward.1} parent=5 // pred_region
      %s266 = ssub.s32 %s13, 1
      %s267 = ssub.s32 1, %s22
      %s268 = smul.u32 %s23, %s267
      %s269 = smul.u32 2, %s268
      %p270 = scmp.lt.s32.totalorder %s269, 1
      %s271 = scalar_select %p270, %s269, 1
      %s272 = smul.addr %s271, 8
      %s273 = smul.addr %s272, 4
      %s274 = scalar_lea.vmem %s0, %s273
      %p275 = pneg %p55
      %p276 = pneg %p52
      %p277 = pneg %p76
      %p278 = pneg %p73
      %p279 = pneg %p97
      %p280 = pneg %p94
      %p281 = pneg %p118
      %p282 = pneg %p115
      %p283 = pneg %p139
      %p284 = pneg %p136
      %p285 = pneg %p160
      %p286 = pneg %p157
      %p287 = pneg %p181
      %p288 = pneg %p178
      %p289 = pneg %p209
      %p290 = pneg %p206
      %s291 = smul.u32 %s23, %s22
      %s292 = smul.u32 2, %s291
      %p293 = scmp.lt.s32.totalorder %s292, 1
      %s294 = scalar_select %p293, %s292, 1
      %s295 = smul.addr %s294, 8
      %s296 = scalar_lea.vmem %s7, %s295
      %s297 = ssub.s32 1, %s22
      %s298 = smul.u32 %s23, %s297
      %s299 = smul.u32 2, %s298
      %p300 = scmp.lt.s32.totalorder %s299, 1
      %s301 = scalar_select %p300, %s299, 1
      %s302 = smul.addr %s301, 8
      %s303 = smul.addr %s302, 4
      %s304 = scalar_lea.vmem %s0, %s303
      %s305 = ssub.s32 1, %s22
      %s306 = smul.u32 %s23, %s305
      %s307 = smul.u32 2, %s306
      %s308 = smul.u32 %s23, %s22
      %s309 = smul.u32 2, %s308
      %p310 = scmp.lt.s32.totalorder %s309, 1
      %s311 = scalar_select %p310, %s309, 1
      %s312 = smul.addr %s311, 8
      %s313 = scalar_lea.vmem %s7, %s312
      %s314 = smul.u32 %s23, %s22
      %s315 = smul.u32 2, %s314
      %s317 = smul.u32 %s23, 16
      %p318 = scmp.eq.s32.totalorder %s22, 0
      %p319 = scmp.eq.s32.totalorder %s23, 0
      %p320 = pnand %p318, %p319
      %p321 = pneg %p320
      // Predicated region
      $region49: #{hard_routing_forward.1} parent=47 // pred_check
        _
      $region50: #{hard_routing_forward.1} parent=47 // pred_check_branch
        %323 = sbr.rel (%p320) target = $region52
      $region51: #{hard_routing_forward.1} parent=47 // pred_region
        %vm324 = vcmask 253952
        %325 = vst.msk [vmem:[#allocation3] sm:$0x1] %vm324, 0.0
      $region52: #{hard_routing_forward.1} parent=47 // pred_fallthru
        _
      // Predicated region
      $region53: #{hard_routing_forward.1} parent=47 // pred_check
        %p326 = pneg %p318
      $region54: #{hard_routing_forward.1} parent=47 // pred_check_branch
        %328 = sbr.rel (%p326) target = $region56
      $region55: #{hard_routing_forward.1} parent=47 // pred_region
        %v329 = vld [vmem:[%s304] sm:$0xff]
        %v330 = vld [vmem:[%s304 + $0x8] sm:$0xff]
        %v331 = vld [vmem:[%s304 + $0x10] sm:$0xff]
        %v332 = vld [vmem:[%s304 + $0x18] sm:$0xff]
        %v333 = vld [vmem:[%s304 + $0x20] sm:$0xff]
        %v334 = vld [vmem:[%s304 + $0x28] sm:$0xff]
        %v335 = vld [vmem:[%s304 + $0x30] sm:$0xff]
        %v336 = vld [vmem:[%s304 + $0x38] sm:$0xff]
        %v337 = vld [vmem:[%s1] sm:$0xf]
        %v338 = vld [vmem:[%s1 + $0x4] sm:$0xf]
        %v339 = vld [vmem:[%s1 + $0x8] sm:$0xf]
        %v340 = vld [vmem:[%s1 + $0xc] sm:$0xf]
        %v341 = vld [vmem:[%s1 + $0x10] sm:$0xf]
        %v342 = vld [vmem:[%s1 + $0x14] sm:$0xf]
        %v343 = vld [vmem:[%s1 + $0x18] sm:$0xf]
        %v344 = vld [vmem:[%s1 + $0x1c] sm:$0xf]
        %v345 = vld [vmem:[%s1 + $0x20] sm:$0xf]
        %v346 = vld [vmem:[%s1 + $0x24] sm:$0xf]
        %v347 = vld [vmem:[%s1 + $0x28] sm:$0xf]
        %v348 = vld [vmem:[%s1 + $0x2c] sm:$0xf]
        %v349 = vld [vmem:[%s1 + $0x30] sm:$0xf]
        %v350 = vld [vmem:[%s1 + $0x34] sm:$0xf]
        %v351 = vld [vmem:[%s1 + $0x38] sm:$0xf]
        %v352 = vld [vmem:[%s1 + $0x3c] sm:$0xf]
        %v353 = vld [vmem:[%s1 + $0x40] sm:$0xf]
        %v354 = vld [vmem:[%s1 + $0x44] sm:$0xf]
        %v355 = vld [vmem:[%s1 + $0x48] sm:$0xf]
        %v356 = vld [vmem:[%s1 + $0x4c] sm:$0xf]
        %v357 = vld [vmem:[%s1 + $0x50] sm:$0xf]
        %v358 = vld [vmem:[%s1 + $0x54] sm:$0xf]
        %v359 = vld [vmem:[%s1 + $0x58] sm:$0xf]
        %v360 = vld [vmem:[%s1 + $0x5c] sm:$0xf]
        %v361 = vld [vmem:[%s1 + $0x60] sm:$0xf]
        %v362 = vld [vmem:[%s1 + $0x64] sm:$0xf]
        %v363 = vld [vmem:[%s1 + $0x68] sm:$0xf]
        %v364 = vld [vmem:[%s1 + $0x6c] sm:$0xf]
        %v365 = vld [vmem:[%s1 + $0x70] sm:$0xf]
        %v366 = vld [vmem:[%s1 + $0x74] sm:$0xf]
        %v367 = vld [vmem:[%s1 + $0x78] sm:$0xf]
        %v368 = vld [vmem:[%s1 + $0x7c] sm:$0xf]
        %v369 = vld [vmem:[%s1 + $0x80] sm:$0xf]
        %v370 = vld [vmem:[%s1 + $0x84] sm:$0xf]
        %v371 = vld [vmem:[%s1 + $0x88] sm:$0xf]
        %v372 = vld [vmem:[%s1 + $0x8c] sm:$0xf]
        %v373 = vld [vmem:[%s1 + $0x90] sm:$0xf]
        %v374 = vld [vmem:[%s1 + $0x94] sm:$0xf]
        %v375 = vld [vmem:[%s1 + $0x98] sm:$0xf]
        %v376 = vld [vmem:[%s1 + $0x9c] sm:$0xf]
        %v377 = vld [vmem:[%s1 + $0xa0] sm:$0xf]
        %v378 = vld [vmem:[%s1 + $0xa4] sm:$0xf]
        %v379 = vld [vmem:[%s1 + $0xa8] sm:$0xf]
        %v380 = vld [vmem:[%s1 + $0xac] sm:$0xf]
        %v381 = vld [vmem:[%s1 + $0xb0] sm:$0xf]
        %v382 = vld [vmem:[%s1 + $0xb4] sm:$0xf]
        %v383 = vld [vmem:[%s1 + $0xb8] sm:$0xf]
        %v384 = vld [vmem:[%s1 + $0xbc] sm:$0xf]
        %v385 = vld [vmem:[%s1 + $0xc0] sm:$0xf]
        %v386 = vld [vmem:[%s1 + $0xc4] sm:$0xf]
        %v387 = vld [vmem:[%s1 + $0xc8] sm:$0xf]
        %v388 = vld [vmem:[%s1 + $0xcc] sm:$0xf]
        %v389 = vld [vmem:[%s1 + $0xd0] sm:$0xf]
        %v390 = vld [vmem:[%s1 + $0xd4] sm:$0xf]
        %v391 = vld [vmem:[%s1 + $0xd8] sm:$0xf]
        %v392 = vld [vmem:[%s1 + $0xdc] sm:$0xf]
        %v393 = vld [vmem:[%s1 + $0xe0] sm:$0xf]
        %v394 = vld [vmem:[%s1 + $0xe4] sm:$0xf]
        %v395 = vld [vmem:[%s1 + $0xe8] sm:$0xf]
        %v396 = vld [vmem:[%s1 + $0xec] sm:$0xf]
        %v397 = vld [vmem:[%s1 + $0xf0] sm:$0xf]
        %v398 = vld [vmem:[%s1 + $0xf4] sm:$0xf]
        %v399 = vld [vmem:[%s1 + $0xf8] sm:$0xf]
        %v400 = vld [vmem:[%s1 + $0xfc] sm:$0xf]
        %v401 = vld [vmem:[%s1 + $0x100] sm:$0xf]
        %v402 = vld [vmem:[%s1 + $0x104] sm:$0xf]
        %v403 = vld [vmem:[%s1 + $0x108] sm:$0xf]
        %v404 = vld [vmem:[%s1 + $0x10c] sm:$0xf]
        %v405 = vld [vmem:[%s1 + $0x110] sm:$0xf]
        %v406 = vld [vmem:[%s1 + $0x114] sm:$0xf]
        %v407 = vld [vmem:[%s1 + $0x118] sm:$0xf]
        %v408 = vld [vmem:[%s1 + $0x11c] sm:$0xf]
        %v409 = vld [vmem:[%s1 + $0x120] sm:$0xf]
        %v410 = vld [vmem:[%s1 + $0x124] sm:$0xf]
        %v411 = vld [vmem:[%s1 + $0x128] sm:$0xf]
        %v412 = vld [vmem:[%s1 + $0x12c] sm:$0xf]
        %v413 = vld [vmem:[%s1 + $0x130] sm:$0xf]
        %v414 = vld [vmem:[%s1 + $0x134] sm:$0xf]
        %v415 = vld [vmem:[%s1 + $0x138] sm:$0xf]
        %v416 = vld [vmem:[%s1 + $0x13c] sm:$0xf]
        %v417 = vld [vmem:[%s1 + $0x140] sm:$0xf]
        %v418 = vld [vmem:[%s1 + $0x144] sm:$0xf]
        %v419 = vld [vmem:[%s1 + $0x148] sm:$0xf]
        %v420 = vld [vmem:[%s1 + $0x14c] sm:$0xf]
        %v421 = vld [vmem:[%s1 + $0x150] sm:$0xf]
        %v422 = vld [vmem:[%s1 + $0x154] sm:$0xf]
        %v423 = vld [vmem:[%s1 + $0x158] sm:$0xf]
        %v424 = vld [vmem:[%s1 + $0x15c] sm:$0xf]
        %v425 = vld [vmem:[%s1 + $0x160] sm:$0xf]
        %v426 = vld [vmem:[%s1 + $0x164] sm:$0xf]
        %v427 = vld [vmem:[%s1 + $0x168] sm:$0xf]
        %v428 = vld [vmem:[%s1 + $0x16c] sm:$0xf]
        %v429 = vld [vmem:[%s1 + $0x170] sm:$0xf]
        %v430 = vld [vmem:[%s1 + $0x174] sm:$0xf]
        %v431 = vld [vmem:[%s1 + $0x178] sm:$0xf]
        %v432 = vld [vmem:[%s1 + $0x17c] sm:$0xf]
        %v433 = vld [vmem:[%s1 + $0x180] sm:$0xf]
        %v434 = vld [vmem:[%s1 + $0x184] sm:$0xf]
        %v435 = vld [vmem:[%s1 + $0x188] sm:$0xf]
        %v436 = vld [vmem:[%s1 + $0x18c] sm:$0xf]
        %v437 = vld [vmem:[%s1 + $0x190] sm:$0xf]
        %v438 = vld [vmem:[%s1 + $0x194] sm:$0xf]
        %v439 = vld [vmem:[%s1 + $0x198] sm:$0xf]
        %v440 = vld [vmem:[%s1 + $0x19c] sm:$0xf]
        %v441 = vld [vmem:[%s1 + $0x1a0] sm:$0xf]
        %v442 = vld [vmem:[%s1 + $0x1a4] sm:$0xf]
        %v443 = vld [vmem:[%s1 + $0x1a8] sm:$0xf]
        %v444 = vld [vmem:[%s1 + $0x1ac] sm:$0xf]
        %v445 = vld [vmem:[%s1 + $0x1b0] sm:$0xf]
        %v446 = vld [vmem:[%s1 + $0x1b4] sm:$0xf]
        %v447 = vld [vmem:[%s1 + $0x1b8] sm:$0xf]
        %v448 = vld [vmem:[%s1 + $0x1bc] sm:$0xf]
        %v449 = vld [vmem:[%s1 + $0x1c0] sm:$0xf]
        %v450 = vld [vmem:[%s1 + $0x1c4] sm:$0xf]
        %v451 = vld [vmem:[%s1 + $0x1c8] sm:$0xf]
        %v452 = vld [vmem:[%s1 + $0x1cc] sm:$0xf]
        %v453 = vld [vmem:[%s1 + $0x1d0] sm:$0xf]
        %v454 = vld [vmem:[%s1 + $0x1d4] sm:$0xf]
        %v455 = vld [vmem:[%s1 + $0x1d8] sm:$0xf]
        %v456 = vld [vmem:[%s1 + $0x1dc] sm:$0xf]
        %v457 = vld [vmem:[%s1 + $0x1e0] sm:$0xf]
        %v458 = vld [vmem:[%s1 + $0x1e4] sm:$0xf]
        %v459 = vld [vmem:[%s1 + $0x1e8] sm:$0xf]
        %v460 = vld [vmem:[%s1 + $0x1ec] sm:$0xf]
        %v461 = vld [vmem:[%s1 + $0x1f0] sm:$0xf]
        %v462 = vld [vmem:[%s1 + $0x1f4] sm:$0xf]
        %v463 = vld [vmem:[%s1 + $0x1f8] sm:$0xf]
        %v464 = vld [vmem:[%s1 + $0x1fc] sm:$0xf]
        %v465 = vld [vmem:[%s2] sm:$0x1]
        %v467 = vlaneseq
        %v468 = vshrl.u32 %v467, 7
        %v469 = vsub.s32 0, %v468
        %v470 = vrot.slane %v465, %v469
        %v480 = vunpack.c.l.b16 %v329
        %v481 = vunpack.c.h.b16 %v329
        %v482 = vunpack.c.l.b16 %v330
        %v483 = vunpack.c.h.b16 %v330
        %v484 = vunpack.c.l.b16 %v331
        %v485 = vunpack.c.h.b16 %v331
        %v486 = vunpack.c.l.b16 %v332
        %v487 = vunpack.c.h.b16 %v332
        %v488 = vunpack.c.l.b16 %v333
        %v489 = vunpack.c.h.b16 %v333
        %v490 = vunpack.c.l.b16 %v334
        %v491 = vunpack.c.h.b16 %v334
        %v492 = vunpack.c.l.b16 %v335
        %v493 = vunpack.c.h.b16 %v335
        %v494 = vunpack.c.l.b16 %v336
        %v495 = vunpack.c.h.b16 %v336
        %v496 = vpack.c.b16 %v488, %v480
        %v497 = vpack.c.b16 %v489, %v481
        %v498 = vpack.c.b16 %v490, %v482
        %v499 = vpack.c.b16 %v491, %v483
        %v500 = vpack.c.b16 %v492, %v484
        %v501 = vpack.c.b16 %v493, %v485
        %v502 = vpack.c.b16 %v494, %v486
        %v503 = vpack.c.b16 %v495, %v487
        %v640 = vunpack.c.l.b16 %v337
        %v641 = vunpack.c.l.b16 %v338
        %v642 = vunpack.c.l.b16 %v339
        %v643 = vunpack.c.l.b16 %v340
        %v644 = vunpack.c.l.b16 %v341
        %v645 = vunpack.c.l.b16 %v342
        %v646 = vunpack.c.l.b16 %v343
        %v647 = vunpack.c.l.b16 %v344
        %v648 = vunpack.c.l.b16 %v345
        %v649 = vunpack.c.l.b16 %v346
        %v650 = vunpack.c.l.b16 %v347
        %v651 = vunpack.c.l.b16 %v348
        %v652 = vunpack.c.l.b16 %v349
        %v653 = vunpack.c.l.b16 %v350
        %v654 = vunpack.c.l.b16 %v351
        %v655 = vunpack.c.l.b16 %v352
        %v656 = vunpack.c.l.b16 %v353
        %v657 = vunpack.c.l.b16 %v354
        %v658 = vunpack.c.l.b16 %v355
        %v659 = vunpack.c.l.b16 %v356
        %v660 = vunpack.c.l.b16 %v357
        %v661 = vunpack.c.l.b16 %v358
        %v662 = vunpack.c.l.b16 %v359
        %v663 = vunpack.c.l.b16 %v360
        %v664 = vunpack.c.l.b16 %v361
        %v665 = vunpack.c.l.b16 %v362
        %v666 = vunpack.c.l.b16 %v363
        %v667 = vunpack.c.l.b16 %v364
        %v668 = vunpack.c.l.b16 %v365
        %v669 = vunpack.c.l.b16 %v366
        %v670 = vunpack.c.l.b16 %v367
        %v671 = vunpack.c.l.b16 %v368
        %v672 = vunpack.c.l.b16 %v369
        %v673 = vunpack.c.l.b16 %v370
        %v674 = vunpack.c.l.b16 %v371
        %v675 = vunpack.c.l.b16 %v372
        %v676 = vunpack.c.l.b16 %v373
        %v677 = vunpack.c.l.b16 %v374
        %v678 = vunpack.c.l.b16 %v375
        %v679 = vunpack.c.l.b16 %v376
        %v680 = vunpack.c.l.b16 %v377
        %v681 = vunpack.c.l.b16 %v378
        %v682 = vunpack.c.l.b16 %v379
        %v683 = vunpack.c.l.b16 %v380
        %v684 = vunpack.c.l.b16 %v381
        %v685 = vunpack.c.l.b16 %v382
        %v686 = vunpack.c.l.b16 %v383
        %v687 = vunpack.c.l.b16 %v384
        %v688 = vunpack.c.l.b16 %v385
        %v689 = vunpack.c.l.b16 %v386
        %v690 = vunpack.c.l.b16 %v387
        %v691 = vunpack.c.l.b16 %v388
        %v692 = vunpack.c.l.b16 %v389
        %v693 = vunpack.c.l.b16 %v390
        %v694 = vunpack.c.l.b16 %v391
        %v695 = vunpack.c.l.b16 %v392
        %v696 = vunpack.c.l.b16 %v393
        %v697 = vunpack.c.l.b16 %v394
        %v698 = vunpack.c.l.b16 %v395
        %v699 = vunpack.c.l.b16 %v396
        %v700 = vunpack.c.l.b16 %v397
        %v701 = vunpack.c.l.b16 %v398
        %v702 = vunpack.c.l.b16 %v399
        %v703 = vunpack.c.l.b16 %v400
        %v704 = vunpack.c.l.b16 %v401
        %v705 = vunpack.c.l.b16 %v402
        %v706 = vunpack.c.l.b16 %v403
        %v707 = vunpack.c.l.b16 %v404
        %v708 = vunpack.c.l.b16 %v405
        %v709 = vunpack.c.l.b16 %v406
        %v710 = vunpack.c.l.b16 %v407
        %v711 = vunpack.c.l.b16 %v408
        %v712 = vunpack.c.l.b16 %v409
        %v713 = vunpack.c.l.b16 %v410
        %v714 = vunpack.c.l.b16 %v411
        %v715 = vunpack.c.l.b16 %v412
        %v716 = vunpack.c.l.b16 %v413
        %v717 = vunpack.c.l.b16 %v414
        %v718 = vunpack.c.l.b16 %v415
        %v719 = vunpack.c.l.b16 %v416
        %v720 = vunpack.c.l.b16 %v417
        %v721 = vunpack.c.l.b16 %v418
        %v722 = vunpack.c.l.b16 %v419
        %v723 = vunpack.c.l.b16 %v420
        %v724 = vunpack.c.l.b16 %v421
        %v725 = vunpack.c.l.b16 %v422
        %v726 = vunpack.c.l.b16 %v423
        %v727 = vunpack.c.l.b16 %v424
        %v728 = vunpack.c.l.b16 %v425
        %v729 = vunpack.c.l.b16 %v426
        %v730 = vunpack.c.l.b16 %v427
        %v731 = vunpack.c.l.b16 %v428
        %v732 = vunpack.c.l.b16 %v429
        %v733 = vunpack.c.l.b16 %v430
        %v734 = vunpack.c.l.b16 %v431
        %v735 = vunpack.c.l.b16 %v432
        %v736 = vunpack.c.l.b16 %v433
        %v737 = vunpack.c.l.b16 %v434
        %v738 = vunpack.c.l.b16 %v435
        %v739 = vunpack.c.l.b16 %v436
        %v740 = vunpack.c.l.b16 %v437
        %v741 = vunpack.c.l.b16 %v438
        %v742 = vunpack.c.l.b16 %v439
        %v743 = vunpack.c.l.b16 %v440
        %v744 = vunpack.c.l.b16 %v441
        %v745 = vunpack.c.l.b16 %v442
        %v746 = vunpack.c.l.b16 %v443
        %v747 = vunpack.c.l.b16 %v444
        %v748 = vunpack.c.l.b16 %v445
        %v749 = vunpack.c.l.b16 %v446
        %v750 = vunpack.c.l.b16 %v447
        %v751 = vunpack.c.l.b16 %v448
        %v752 = vunpack.c.l.b16 %v449
        %v753 = vunpack.c.l.b16 %v450
        %v754 = vunpack.c.l.b16 %v451
        %v755 = vunpack.c.l.b16 %v452
        %v756 = vunpack.c.l.b16 %v453
        %v757 = vunpack.c.l.b16 %v454
        %v758 = vunpack.c.l.b16 %v455
        %v759 = vunpack.c.l.b16 %v456
        %v760 = vunpack.c.l.b16 %v457
        %v761 = vunpack.c.l.b16 %v458
        %v762 = vunpack.c.l.b16 %v459
        %v763 = vunpack.c.l.b16 %v460
        %v764 = vunpack.c.l.b16 %v461
        %v765 = vunpack.c.l.b16 %v462
        %v766 = vunpack.c.l.b16 %v463
        %v767 = vunpack.c.l.b16 %v464
        %v768 = vpack.c.b16 %v641, %v640
        %v769 = vpack.c.b16 %v643, %v642
        %v770 = vpack.c.b16 %v645, %v644
        %v771 = vpack.c.b16 %v647, %v646
        %v772 = vpack.c.b16 %v649, %v648
        %v773 = vpack.c.b16 %v651, %v650
        %v774 = vpack.c.b16 %v653, %v652
        %v775 = vpack.c.b16 %v655, %v654
        %v776 = vpack.c.b16 %v657, %v656
        %v777 = vpack.c.b16 %v659, %v658
        %v778 = vpack.c.b16 %v661, %v660
        %v779 = vpack.c.b16 %v663, %v662
        %v780 = vpack.c.b16 %v665, %v664
        %v781 = vpack.c.b16 %v667, %v666
        %v782 = vpack.c.b16 %v669, %v668
        %v783 = vpack.c.b16 %v671, %v670
        %v784 = vpack.c.b16 %v673, %v672
        %v785 = vpack.c.b16 %v675, %v674
        %v786 = vpack.c.b16 %v677, %v676
        %v787 = vpack.c.b16 %v679, %v678
        %v788 = vpack.c.b16 %v681, %v680
        %v789 = vpack.c.b16 %v683, %v682
        %v790 = vpack.c.b16 %v685, %v684
        %v791 = vpack.c.b16 %v687, %v686
        %v792 = vpack.c.b16 %v689, %v688
        %v793 = vpack.c.b16 %v691, %v690
        %v794 = vpack.c.b16 %v693, %v692
        %v795 = vpack.c.b16 %v695, %v694
        %v796 = vpack.c.b16 %v697, %v696
        %v797 = vpack.c.b16 %v699, %v698
        %v798 = vpack.c.b16 %v701, %v700
        %v799 = vpack.c.b16 %v703, %v702
        %v800 = vpack.c.b16 %v705, %v704
        %v801 = vpack.c.b16 %v707, %v706
        %v802 = vpack.c.b16 %v709, %v708
        %v803 = vpack.c.b16 %v711, %v710
        %v804 = vpack.c.b16 %v713, %v712
        %v805 = vpack.c.b16 %v715, %v714
        %v806 = vpack.c.b16 %v717, %v716
        %v807 = vpack.c.b16 %v719, %v718
        %v808 = vpack.c.b16 %v721, %v720
        %v809 = vpack.c.b16 %v723, %v722
        %v810 = vpack.c.b16 %v725, %v724
        %v811 = vpack.c.b16 %v727, %v726
        %v812 = vpack.c.b16 %v729, %v728
        %v813 = vpack.c.b16 %v731, %v730
        %v814 = vpack.c.b16 %v733, %v732
        %v815 = vpack.c.b16 %v735, %v734
        %v816 = vpack.c.b16 %v737, %v736
        %v817 = vpack.c.b16 %v739, %v738
        %v818 = vpack.c.b16 %v741, %v740
        %v819 = vpack.c.b16 %v743, %v742
        %v820 = vpack.c.b16 %v745, %v744
        %v821 = vpack.c.b16 %v747, %v746
        %v822 = vpack.c.b16 %v749, %v748
        %v823 = vpack.c.b16 %v751, %v750
        %v824 = vpack.c.b16 %v753, %v752
        %v825 = vpack.c.b16 %v755, %v754
        %v826 = vpack.c.b16 %v757, %v756
        %v827 = vpack.c.b16 %v759, %v758
        %v828 = vpack.c.b16 %v761, %v760
        %v829 = vpack.c.b16 %v763, %v762
        %v830 = vpack.c.b16 %v765, %v764
        %v831 = vpack.c.b16 %v767, %v766
        %896 = vmatprep.subr.bf16.mxu0 0
        %897 = vmatpush1.bf16.msra.mxu0 %v768
        %898 = vmatprep.subr.bf16.mxu0 0
        %899 = vmatpush1.bf16.msra.mxu0 %v769
        %900 = vmatprep.subr.bf16.mxu0 0
        %901 = vmatpush1.bf16.msra.mxu0 %v770
        %902 = vmatprep.subr.bf16.mxu0 0
        %903 = vmatpush1.bf16.msra.mxu0 %v771
        %904 = vmatprep.subr.bf16.mxu0 0
        %905 = vmatpush1.bf16.msra.mxu0 %v772
        %906 = vmatprep.subr.bf16.mxu0 0
        %907 = vmatpush1.bf16.msra.mxu0 %v773
        %908 = vmatprep.subr.bf16.mxu0 0
        %909 = vmatpush1.bf16.msra.mxu0 %v774
        %910 = vmatprep.subr.bf16.mxu0 0
        %911 = vmatpush1.bf16.msra.mxu0 %v775
        %912 = vmatprep.subr.bf16.mxu0 0
        %913 = vmatpush1.bf16.msra.mxu0 %v776
        %914 = vmatprep.subr.bf16.mxu0 0
        %915 = vmatpush1.bf16.msra.mxu0 %v777
        %916 = vmatprep.subr.bf16.mxu0 0
        %917 = vmatpush1.bf16.msra.mxu0 %v778
        %918 = vmatprep.subr.bf16.mxu0 0
        %919 = vmatpush1.bf16.msra.mxu0 %v779
        %920 = vmatprep.subr.bf16.mxu0 0
        %921 = vmatpush1.bf16.msra.mxu0 %v780
        %922 = vmatprep.subr.bf16.mxu0 0
        %923 = vmatpush1.bf16.msra.mxu0 %v781
        %924 = vmatprep.subr.bf16.mxu0 0
        %925 = vmatpush1.bf16.msra.mxu0 %v782
        %926 = vmatprep.subr.bf16.mxu0 0
        %927 = vmatpush1.bf16.msra.mxu0 %v783
        %928 = vmatprep.mubr.bf16.mxu0 %v497
        %929 = vmatmul.mubr.bf16.gmra.mrb[0].mxu0 %v496
        %v930 = vpop.f32.mrb[0].mxu0
        %v931 = vadd.f32 %v470, %v930
        %v932 = vpop.f32.mrb[0].mxu0
        %v933 = vpop.f32.mrb[0].mxu0
        %v934 = vadd.f32 %v470, %v933
        %v935 = vpop.f32.mrb[0].mxu0
        %936 = vdwg.mxu0
        %937 = vmatprep.subr.bf16.mxu0 0
        %938 = vmatpush1.bf16.msra.mxu0 %v784
        %939 = vmatprep.subr.bf16.mxu0 0
        %940 = vmatpush1.bf16.msra.mxu0 %v785
        %941 = vmatprep.subr.bf16.mxu0 0
        %942 = vmatpush1.bf16.msra.mxu0 %v786
        %943 = vmatprep.subr.bf16.mxu0 0
        %944 = vmatpush1.bf16.msra.mxu0 %v787
        %945 = vmatprep.subr.bf16.mxu0 0
        %946 = vmatpush1.bf16.msra.mxu0 %v788
        %947 = vmatprep.subr.bf16.mxu0 0
        %948 = vmatpush1.bf16.msra.mxu0 %v789
        %949 = vmatprep.subr.bf16.mxu0 0
        %950 = vmatpush1.bf16.msra.mxu0 %v790
        %951 = vmatprep.subr.bf16.mxu0 0
        %952 = vmatpush1.bf16.msra.mxu0 %v791
        %953 = vmatprep.subr.bf16.mxu0 0
        %954 = vmatpush1.bf16.msra.mxu0 %v792
        %955 = vmatprep.subr.bf16.mxu0 0
        %956 = vmatpush1.bf16.msra.mxu0 %v793
        %957 = vmatprep.subr.bf16.mxu0 0
        %958 = vmatpush1.bf16.msra.mxu0 %v794
        %959 = vmatprep.subr.bf16.mxu0 0
        %960 = vmatpush1.bf16.msra.mxu0 %v795
        %961 = vmatprep.subr.bf16.mxu0 0
        %962 = vmatpush1.bf16.msra.mxu0 %v796
        %963 = vmatprep.subr.bf16.mxu0 0
        %964 = vmatpush1.bf16.msra.mxu0 %v797
        %965 = vmatprep.subr.bf16.mxu0 0
        %966 = vmatpush1.bf16.msra.mxu0 %v798
        %967 = vmatprep.subr.bf16.mxu0 0
        %968 = vmatpush1.bf16.msra.mxu0 %v799
        %969 = vmatprep.mubr.bf16.mxu0 %v499
        %970 = vmatmul.mubr.bf16.gmra.mrb[0].mxu0 %v498
        %v971 = vpop.f32.mrb[0].mxu0
        %v972 = vadd.f32 %v931, %v971
        %v973 = vpop.f32.mrb[0].mxu0
        %v974 = vpop.f32.mrb[0].mxu0
        %v975 = vadd.f32 %v934, %v974
        %v976 = vpop.f32.mrb[0].mxu0
        %977 = vdwg.mxu0
        %978 = vmatprep.subr.bf16.mxu0 0
        %979 = vmatpush1.bf16.msra.mxu0 %v800
        %980 = vmatprep.subr.bf16.mxu0 0
        %981 = vmatpush1.bf16.msra.mxu0 %v801
        %982 = vmatprep.subr.bf16.mxu0 0
        %983 = vmatpush1.bf16.msra.mxu0 %v802
        %984 = vmatprep.subr.bf16.mxu0 0
        %985 = vmatpush1.bf16.msra.mxu0 %v803
        %986 = vmatprep.subr.bf16.mxu0 0
        %987 = vmatpush1.bf16.msra.mxu0 %v804
        %988 = vmatprep.subr.bf16.mxu0 0
        %989 = vmatpush1.bf16.msra.mxu0 %v805
        %990 = vmatprep.subr.bf16.mxu0 0
        %991 = vmatpush1.bf16.msra.mxu0 %v806
        %992 = vmatprep.subr.bf16.mxu0 0
        %993 = vmatpush1.bf16.msra.mxu0 %v807
        %994 = vmatprep.subr.bf16.mxu0 0
        %995 = vmatpush1.bf16.msra.mxu0 %v808
        %996 = vmatprep.subr.bf16.mxu0 0
        %997 = vmatpush1.bf16.msra.mxu0 %v809
        %998 = vmatprep.subr.bf16.mxu0 0
        %999 = vmatpush1.bf16.msra.mxu0 %v810
        %1000 = vmatprep.subr.bf16.mxu0 0
        %1001 = vmatpush1.bf16.msra.mxu0 %v811
        %1002 = vmatprep.subr.bf16.mxu0 0
        %1003 = vmatpush1.bf16.msra.mxu0 %v812
        %1004 = vmatprep.subr.bf16.mxu0 0
        %1005 = vmatpush1.bf16.msra.mxu0 %v813
        %1006 = vmatprep.subr.bf16.mxu0 0
        %1007 = vmatpush1.bf16.msra.mxu0 %v814
        %1008 = vmatprep.subr.bf16.mxu0 0
        %1009 = vmatpush1.bf16.msra.mxu0 %v815
        %1010 = vmatprep.mubr.bf16.mxu0 %v501
        %1011 = vmatmul.mubr.bf16.gmra.mrb[0].mxu0 %v500
        %v1012 = vpop.f32.mrb[0].mxu0
        %v1013 = vadd.f32 %v972, %v1012
        %v1014 = vpop.f32.mrb[0].mxu0
        %v1015 = vpop.f32.mrb[0].mxu0
        %v1016 = vadd.f32 %v975, %v1015
        %v1017 = vpop.f32.mrb[0].mxu0
        %1018 = vdwg.mxu0
        %1019 = vmatprep.subr.bf16.mxu0 0
        %1020 = vmatpush1.bf16.msra.mxu0 %v816
        %1021 = vmatprep.subr.bf16.mxu0 0
        %1022 = vmatpush1.bf16.msra.mxu0 %v817
        %1023 = vmatprep.subr.bf16.mxu0 0
        %1024 = vmatpush1.bf16.msra.mxu0 %v818
        %1025 = vmatprep.subr.bf16.mxu0 0
        %1026 = vmatpush1.bf16.msra.mxu0 %v819
        %1027 = vmatprep.subr.bf16.mxu0 0
        %1028 = vmatpush1.bf16.msra.mxu0 %v820
        %1029 = vmatprep.subr.bf16.mxu0 0
        %1030 = vmatpush1.bf16.msra.mxu0 %v821
        %1031 = vmatprep.subr.bf16.mxu0 0
        %1032 = vmatpush1.bf16.msra.mxu0 %v822
        %1033 = vmatprep.subr.bf16.mxu0 0
        %1034 = vmatpush1.bf16.msra.mxu0 %v823
        %1035 = vmatprep.subr.bf16.mxu0 0
        %1036 = vmatpush1.bf16.msra.mxu0 %v824
        %1037 = vmatprep.subr.bf16.mxu0 0
        %1038 = vmatpush1.bf16.msra.mxu0 %v825
        %1039 = vmatprep.subr.bf16.mxu0 0
        %1040 = vmatpush1.bf16.msra.mxu0 %v826
        %1041 = vmatprep.subr.bf16.mxu0 0
        %1042 = vmatpush1.bf16.msra.mxu0 %v827
        %1043 = vmatprep.subr.bf16.mxu0 0
        %1044 = vmatpush1.bf16.msra.mxu0 %v828
        %1045 = vmatprep.subr.bf16.mxu0 0
        %1046 = vmatpush1.bf16.msra.mxu0 %v829
        %1047 = vmatprep.subr.bf16.mxu0 0
        %1048 = vmatpush1.bf16.msra.mxu0 %v830
        %1049 = vmatprep.subr.bf16.mxu0 0
        %1050 = vmatpush1.bf16.msra.mxu0 %v831
        %1051 = vmatprep.mubr.bf16.mxu0 %v503
        %1052 = vmatmul.mubr.bf16.gmra.mrb[0].mxu0 %v502
        %v1053 = vpop.f32.mrb[0].mxu0
        %v1054 = vadd.f32 %v1013, %v1053
        %v1055 = vpop.f32.mrb[0].mxu0
        %v1056 = vpop.f32.mrb[0].mxu0
        %v1057 = vadd.f32 %v1016, %v1056
        %v1058 = vpop.f32.mrb[0].mxu0
        %1059 = vdwg.mxu0
        %v1060 = vlaneseq
        %v1061 = vshrl.u32 %v1060, 7
        %v1062 = vadd.s32 %v1061, 8
        %v1063 = vstv %s317
        %v1064 = vadd.s32 %v1063, %v1061
        %v1065 = vadd.s32 %v1063, %v1062
        %vm1066 = vcmp.lt.s32.totalorder %v1064, 8
        %vm1067 = vcmp.lt.s32.totalorder %v1065, 8
        %v1068 = vsel %vm1066, %v1054, 0.0
        %v1069 = vsel %vm1067, %v1057, 0.0
        %s1070 = scalar_lea.vmem [#allocation2], %s317
        %vm1071 = vcmask 261120
        %1072 = vst.msk [vmem:[%s1070] sm:$0xff] %vm1071, %v1068
        %1073 = vst.msk [vmem:[%s1070 + $0x8] sm:$0xff] %vm1071, %v1069
        %v1074 = vld [vmem:[#allocation3] sm:$0x1]
        %v1075 = vsel %vm1071, %v1068, 0.0
        %v1076 = vsel %vm1071, %v1069, 0.0
        %v1077 = vadd.f32 %v1075, %v1076
        %v1078 = vrot.slane %v1077, 4
        %v1079 = vadd.f32 %v1077, %v1078
        %v1080 = vrot.slane %v1079, 2
        %v1081 = vadd.f32 %v1079, %v1080
        %v1082 = vrot.slane %v1081, 1
        %v1083 = vadd.f32 %v1081, %v1082
        %v1084 = vadd.f32 %v1074, %v1083
        %vm1085 = vcmask 253952
        %1086 = vst.msk [vmem:[#allocation3] sm:$0x1] %vm1085, %v1084
      $region56: #{hard_routing_forward.1} parent=47 // pred_fallthru
        _
      %p1087 = scmp.eq.s32.totalorder %s22, 1
      %p1088 = pnand %p1087, %p319
      %p1089 = pneg %p1088
      // Predicated region
      $region57: #{hard_routing_forward.1} parent=47 // pred_check
        _
      $region58: #{hard_routing_forward.1} parent=47 // pred_check_branch
        %1091 = sbr.rel (%p1088) target = $region60
      $region59: #{hard_routing_forward.1} parent=47 // pred_region
        %v1092 = vld [vmem:[#allocation3] sm:$0x1]
        %v1093 = vmul.f32 %v1092, 0.125
        %v1094 = vld [vmem:[#allocation2] sm:$0xff]
        %v1095 = vld [vmem:[#allocation2 + $0x8] sm:$0xff]
        %v1097 = vlaneseq
        %v1098 = vshrl.u32 %v1097, 7
        %v1099 = vsub.s32 0, %v1098
        %v1100 = vrot.slane %v1093, %v1099
        %v1102 = vsub.f32 %v1094, %v1100
        %v1103 = vsub.f32 %v1095, %v1100
        %v1104 = vmul.f32 %v1102, %v1102
        %v1105 = vmul.f32 %v1103, %v1103
        %vm1106 = vcmask 261120
        %v1107 = vsel %vm1106, %v1104, 0.0
        %v1108 = vsel %vm1106, %v1105, 0.0
        %v1109 = vadd.f32 %v1107, %v1108
        %v1110 = vrot.slane %v1109, 4
        %v1111 = vadd.f32 %v1109, %v1110
        %v1112 = vrot.slane %v1111, 2
        %v1113 = vadd.f32 %v1111, %v1112
        %v1114 = vrot.slane %v1113, 1
        %v1115 = vadd.f32 %v1113, %v1114
        %v1116 = vmul.f32 %v1093, %v1093
        %v1117 = vmul.f32 %v1116, 8.0
        %v1118 = vsub.f32 %v1115, %v1117
        %v1119 = vmul.f32 %v1118, 0.125
        %v1120 = vld [vmem:[%s3] sm:$0x1]
        %v1121 = vadd.f32 %v1119, 1e-05
        %v1122 = vrsqrt.pop %v1121
        %v1123 = vmul.f32 %v1120, %v1122
        %vm1124 = vcmask 253952
        %1125 = vst.msk [vmem:[#allocation4] sm:$0x1] %vm1124, %v1123
        %v1126 = vld [vmem:[%s4] sm:$0x1]
        %v1127 = vmul.f32 %v1093, %v1123
        %v1128 = vsub.f32 %v1126, %v1127
        %1129 = vst.msk [vmem:[#allocation5] sm:$0x1] %vm1124, %v1128
      $region60: #{hard_routing_forward.1} parent=47 // pred_fallthru
        _
      // Predicated region
      $region61: #{hard_routing_forward.1} parent=47 // pred_check
        %p1130 = pneg %p1087
      $region62: #{hard_routing_forward.1} parent=47 // pred_check_branch
        %1132 = sbr.rel (%p1130) target = $region64
      $region63: #{hard_routing_forward.1} parent=47 // pred_region
        %s1133 = scalar_lea.vmem [#allocation2], %s317
        %v1134 = vld [vmem:[%s1133] sm:$0xff]
        %v1135 = vld [vmem:[%s1133 + $0x8] sm:$0xff]
        %v1136 = vld [vmem:[#allocation4] sm:$0x1]
        %v1138 = vlaneseq
        %v1139 = vshrl.u32 %v1138, 7
        %v1140 = vsub.s32 0, %v1139
        %v1141 = vrot.slane %v1136, %v1140
        %v1143 = vmul.f32 %v1134, %v1141
        %v1144 = vmul.f32 %v1135, %v1141
        %v1145 = vld [vmem:[#allocation5] sm:$0x1]
        %v1147 = vlaneseq
        %v1148 = vshrl.u32 %v1147, 7
        %v1149 = vsub.s32 0, %v1148
        %v1150 = vrot.slane %v1145, %v1149
        %v1152 = vadd.f32 %v1143, %v1150
        %v1153 = vadd.f32 %v1144, %v1150
        %v1154 = vld [vmem:[%s5] sm:$0xff]
        %v1155 = vld [vmem:[%s5 + $0x8] sm:$0xff]
        %v1156 = vld [vmem:[%s5 + $0x10] sm:$0xff]
        %v1157 = vld [vmem:[%s5 + $0x18] sm:$0xff]
        %v1158 = vld [vmem:[%s6] sm:$0x1]
        %v1160 = vlaneseq
        %v1161 = vshrl.u32 %v1160, 7
        %v1162 = vsub.s32 0, %v1161
        %v1163 = vrot.slane %v1158, %v1162
        %vm1165 = vcmask 261120
        %v1167 = vsel %vm1165, %v1152, 0
        %v1170 = vsel %vm1165, %v1153, 0
        %1172 = vmatprep.subr.mxu0 0.0
        %1173 = vmatpush1.msra.mxu0 %v1154
        %1174 = vmatprep.subr.mxu0 0.0
        %1175 = vmatpush1.msra.mxu0 %v1155
        %1176 = vmatprep.subr.mxu0 0.0
        %1177 = vmatpush1.msra.mxu0 %v1156
        %1178 = vmatprep.subr.mxu0 0.0
        %1179 = vmatpush1.msra.mxu0 %v1157
        %1180 = vmatprep.subr.mxu0 0.0
        %1181 = vmatpush1.msra.mxu0 0.0
        %1182 = vmatprep.subr.mxu0 0.0
        %1183 = vmatpush1.msra.mxu0 0.0
        %1184 = vmatprep.subr.mxu0 0.0
        %1185 = vmatpush1.msra.mxu0 0.0
        %1186 = vmatprep.subr.mxu0 0.0
        %1187 = vmatpush1.msra.mxu0 0.0
        %1188 = vmatprep.subr.mxu0 0.0
        %1189 = vmatpush1.msra.mxu0 0.0
        %1190 = vmatprep.subr.mxu0 0.0
        %1191 = vmatpush1.msra.mxu0 0.0
        %1192 = vmatprep.subr.mxu0 0.0
        %1193 = vmatpush1.msra.mxu0 0.0
        %1194 = vmatprep.subr.mxu0 0.0
        %1195 = vmatpush1.msra.mxu0 0.0
        %1196 = vmatprep.subr.mxu0 0.0
        %1197 = vmatpush1.msra.mxu0 0.0
        %1198 = vmatprep.subr.mxu0 0.0
        %1199 = vmatpush1.msra.mxu0 0.0
        %1200 = vmatprep.subr.mxu0 0.0
        %1201 = vmatpush1.msra.mxu0 0.0
        %1202 = vmatprep.subr.mxu0 0.0
        %1203 = vmatpush1.msra.mxu0 0.0
        %1204 = vmatprep.subr.mxu0 0.0
        %1205 = vmatpush1.msra.mxu0 0.0
        %1206 = vmatprep.subr.mxu0 0.0
        %1207 = vmatpush1.msra.mxu0 0.0
        %1208 = vmatprep.subr.mxu0 0.0
        %1209 = vmatpush1.msra.mxu0 0.0
        %1210 = vmatprep.subr.mxu0 0.0
        %1211 = vmatpush1.msra.mxu0 0.0
        %1212 = vmatprep.subr.mxu0 0.0
        %1213 = vmatpush1.msra.mxu0 0.0
        %1214 = vmatprep.subr.mxu0 0.0
        %1215 = vmatpush1.msra.mxu0 0.0
        %1216 = vmatprep.subr.mxu0 0.0
        %1217 = vmatpush1.msra.mxu0 0.0
        %1218 = vmatprep.subr.mxu0 0.0
        %1219 = vmatpush1.msra.mxu0 0.0
        %1220 = vmatprep.subr.mxu0 0.0
        %1221 = vmatpush1.msra.mxu0 0.0
        %1222 = vmatprep.subr.mxu0 0.0
        %1223 = vmatpush1.msra.mxu0 0.0
        %1224 = vmatprep.subr.mxu0 0.0
        %1225 = vmatpush1.msra.mxu0 0.0
        %1226 = vmatprep.subr.mxu0 0.0
        %1227 = vmatpush1.msra.mxu0 0.0
        %1228 = vmatprep.subr.mxu0 0.0
        %1229 = vmatpush1.msra.mxu0 0.0
        %1230 = vmatprep.subr.mxu0 0.0
        %1231 = vmatpush1.msra.mxu0 0.0
        %1232 = vmatprep.subr.mxu0 0.0
        %1233 = vmatpush1.msra.mxu0 0.0
        %1234 = vmatprep.subr.mxu0 0.0
        %1235 = vmatpush1.msra.mxu0 0.0
        %1236 = vmatprep.mubr.f32.mxu0 0.0
        %1237 = vmatmul.mubr.f32.gmra.mrb[0].mxu0 %v1167
        %v1238 = vpop.f32.mrb[0].mxu0
        %v1239 = vadd.f32 %v1163, %v1238
        %v1240 = vpop.f32.mrb[0].mxu0
        %1241 = vmatprep.mubr.f32.mxu0 0.0
        %1242 = vmatmul.mubr.f32.gmra.mrb[0].mxu0 %v1170
        %v1243 = vpop.f32.mrb[0].mxu0
        %v1244 = vadd.f32 %v1163, %v1243
        %v1245 = vpop.f32.mrb[0].mxu0
        %1246 = vdwg.mxu0
        %v1247 = vlaneseq
        %v1248 = vand.u32 %v1247, 127
        %vm1249 = vcmask 31744
        %v1250 = vsel %vm1249, %v1239, -inf
        %1251 = vmax.xlane.f32.xlu0 %v1250
        %v1252 = vpop.xlane.xlu0 %1251
        %v1253 = vsel %vm1249, %v1244, -inf
        %1254 = vmax.xlane.f32.xlu0 %v1253
        %v1255 = vpop.xlane.xlu0 %1254
        %vm1256 = vcmp.eq.f32.partialorder %v1239, %v1252
        %vm1257 = vcmp.eq.f32.partialorder %v1244, %v1255
        %v1258 = vsel %vm1256, %v1248, 4
        %v1259 = vsel %vm1257, %v1248, 4
        %v1260 = vsel %vm1249, %v1258, 2147483647
        %v1261 = vand.u32 %v1260, 65535
        %v1262 = vshra.s32 %v1260, 16
        %v1263 = vcvt.s32.f32 %v1261
        %v1264 = vcvt.s32.f32 %v1262
        %1265 = vmin.xlane.f32.xlu0 %v1264
        %v1266 = vpop.xlane.xlu0 %1265
        %vm1267 = vcmp.eq.f32.partialorder %v1264, %v1266
        %v1268 = vsel %vm1267, %v1263, inf
        %1269 = vmin.xlane.f32.xlu0 %v1268
        %v1270 = vpop.xlane.xlu0 %1269
        %v1271 = vcvt.f32.s32 %v1270
        %v1272 = vcvt.f32.s32 %v1266
        %v1273 = vshll.u32 %v1272, 16
        %v1274 = vadd.s32 %v1273, %v1271
        %v1275 = vsel %vm1249, %v1259, 2147483647
        %v1276 = vand.u32 %v1275, 65535
        %v1277 = vshra.s32 %v1275, 16
        %v1278 = vcvt.s32.f32 %v1276
        %v1279 = vcvt.s32.f32 %v1277
        %1280 = vmin.xlane.f32.xlu0 %v1279
        %v1281 = vpop.xlane.xlu0 %1280
        %vm1282 = vcmp.eq.f32.partialorder %v1279, %v1281
        %v1283 = vsel %vm1282, %v1278, inf
        %1284 = vmin.xlane.f32.xlu0 %v1283
        %v1285 = vpop.xlane.xlu0 %1284
        %v1286 = vcvt.f32.s32 %v1285
        %v1287 = vcvt.f32.s32 %v1281
        %v1288 = vshll.u32 %v1287, 16
        %v1289 = vadd.s32 %v1288, %v1286
        %vm1290 = vcmp.eq.s32.totalorder %v1248, %v1274
        %vm1291 = vcmp.eq.s32.totalorder %v1248, %v1289
        %v1292 = vsel %vm1290, 1, 0
        %v1293 = vsel %vm1291, 1, 0
        %v1294 = vcvt.s32.f32 %v1292
        %v1295 = vcvt.s32.f32 %v1293
        %1296 = vst.msk [vmem:[%s313] sm:$0xff] %vm1249, %v1294
        %1297 = vst.msk [vmem:[%s313 + $0x8] sm:$0xff] %vm1249, %v1295
      $region64: #{hard_routing_forward.1} parent=47 // pred_fallthru
        _
      %s1298 = smul.u32 %s23, %s22
      %s1299 = smul.u32 2, %s1298
      %p1300 = scmp.lt.s32.totalorder %s1299, 1
      %s1301 = scalar_select %p1300, %s1299, 1
      %s1302 = smul.addr %s1301, 8
      %s1303 = scalar_lea.vmem %s7, %s1302
      // Predicated region
      $region65: #{hard_routing_forward.1} parent=47 // pred_check
        %p1304 = pneg %p206
      $region66: #{hard_routing_forward.1} parent=47 // pred_check_branch
        %1306 = sbr.rel (%p1304) target = $region68
      $region67: #{hard_routing_forward.1} parent=47 // pred_region
        %s1307 = smul.u32 %s23, %s22
        %s1308 = smul.u32 2, %s1307
      $region68: #{hard_routing_forward.1} parent=47 // pred_fallthru
        _
    $region48: #{hard_routing_forward.1} parent=5 // pred_fallthru
      _
    %p1309 = scmp.le.s32.totalorder 2, %s13
    // Predicated region
    $region69: #{hard_routing_forward.1} parent=5 // pred_check
      %p1310 = pneg %p1309
    $region70: #{hard_routing_forward.1} parent=5 // pred_check_branch
      %1312 = sbr.rel (%p1310) target = $region72
    $region71: #{hard_routing_forward.1} parent=5 // pred_region
      %s1313 = ssub.s32 %s13, 2
      // Predicated region
      $region73: #{hard_routing_forward.1} parent=71 // pred_check
        %p1314 = pneg %p212
      $region74: #{hard_routing_forward.1} parent=71 // pred_check_branch
        %1316 = sbr.rel (%p1314) target = $region76
      $region75: #{hard_routing_forward.1} parent=71 // pred_region
        %s1317 = smul.u32 %s25, %s24
        %s1318 = smul.u32 2, %s1317
        %p1319 = scmp.lt.s32.totalorder %s1318, 1
        %s1320 = scalar_select %p1319, %s1318, 1
        %s1321 = smul.addr %s1320, 8
        %s1322 = scalar_lea.vmem %s7, %s1321
      $region76: #{hard_routing_forward.1} parent=71 // pred_fallthru
        _
    $region72: #{hard_routing_forward.1} parent=5 // pred_fallthru
      _
  $region6: #{hard_routing_forward.1} parent=0 // loop_footer
    %s17 = sadd.s32 1, %s13
  $region7: #{hard_routing_forward.1} parent=0 // loop_footer_branch
    %12 = sbr.rel target = $region3
  $region8: #{hard_routing_forward.1} parent=0 // loop_exit
    _

</llo_original>
